<compile_context>
chip_gen: v7x
topology: tpu7x:2x2x1
jax: 0.10.0
libtpu: 0.0.40
codegen_flags: <defaults>
</compile_context>

<pallas_src>
import functools

import jax
import jax.numpy as jnp
from jax import lax
from jax.experimental import pallas as pl
from jax.experimental.pallas import tpu as pltpu


def _pick_tq(hw_pad, budget_bytes=4 * 1024 * 1024):
    """Largest query tile (multiple of 128 dividing hw_pad) whose f32 (TQ, hw_pad)
    score tile fits the budget.  Coarse tiles amortize per-grid-step overhead."""
    if hw_pad * hw_pad * 4 <= budget_bytes:
        return hw_pad
    max_tq = max(128, (budget_bytes // (hw_pad * 4)) // 128 * 128)
    best = 128
    for t in range(128, max_tq + 1, 128):
        if hw_pad % t == 0:
            best = t
    return best


# ----------------------------- spatial attention ----------------------------- #

def _spatial_attn_kernel(*refs, use_bias, n_valid, masked, approx_recip):
    if use_bias:
        x_ref, fr_ref, mqk_ref, wov_ref, bqk_ref, bout_ref, o_ref = refs
    else:
        x_ref, fr_ref, mqk_ref, wov_ref, o_ref = refs
        bqk_ref = bout_ref = None

    cdt = fr_ref.dtype                       # MXU operand dtype; accumulation is f32.

    # Fused query projection: (TQ, Cr) = x_tile @ (scale * Wq^T Wk)  [+ scale * bq@Wk].
    qf = jnp.dot(x_ref[0], mqk_ref[...], preferred_element_type=jnp.float32)
    if use_bias:
        qf = qf + bqk_ref[...]

    # Scores (TQ, HWp): one standard matmul, lane-dense N = HWp.
    s = jnp.dot(qf.astype(cdt), fr_ref[0], preferred_element_type=jnp.float32)
    if masked:                               # padded key columns -> -inf before softmax
        key_idx = lax.broadcasted_iota(jnp.int32, s.shape, 1)
        s = jnp.where(key_idx < n_valid, s, -1e30)

    # Softmax over the key (lane) axis; f32 epilogue.
    m = jnp.max(s, axis=-1, keepdims=True)
    e = jnp.exp(s - m)
    l = jnp.sum(e, axis=-1, keepdims=True)
    inv_l = pl.reciprocal(l, approx=True) if approx_recip else 1.0 / l
    p = e * inv_l

    # t = fr_cf @ p^T (contract over the HWp key axis, transpose-RHS) -> (Cr, TQ).
    t = lax.dot_general(fr_ref[0], p.astype(cdt), (((1,), (1,)), ((), ())),
                        preferred_element_type=jnp.float32)

    # Fused output projection (Wo@Wv): channels-first, lane-dense (C, TQ) writeback.
    out_t = jnp.dot(wov_ref[...], t.astype(cdt), preferred_element_type=jnp.float32)
    if use_bias:
        out_t = out_t + bout_ref[...]
    o_ref[0] = out_t.astype(o_ref.dtype)


def _spatial_attention(x_sf, fr_cf, mqk, wov, bqk, bout, *, n_valid, use_bias,
                       out_dtype):
    """x_sf: (B, HWp, C) token-first queries (zero-padded), fr_cf: (B, Cr, HWp)."""
    B, HWp, C = x_sf.shape
    Cr = fr_cf.shape[1]
    TQ = _pick_tq(HWp)
    grid = (B, HWp // TQ)
    masked = n_valid != HWp
    approx_recip = jnp.dtype(x_sf.dtype) != jnp.dtype(jnp.float32)

    in_specs = [
        pl.BlockSpec((1, TQ, C), lambda b, q: (b, q, 0)),     # query tile of x
        pl.BlockSpec((1, Cr, HWp), lambda b, q: (b, 0, 0)),   # fr plane (acts as K & V)
        pl.BlockSpec((C, Cr), lambda b, q: (0, 0)),           # Mqk (VMEM-resident)
        pl.BlockSpec((C, Cr), lambda b, q: (0, 0)),           # Wov (VMEM-resident)
    ]
    args = [x_sf, fr_cf, mqk, wov]
    if use_bias:
        in_specs += [pl.BlockSpec((1, Cr), lambda b, q: (0, 0)),
                     pl.BlockSpec((C, 1), lambda b, q: (0, 0))]
        args += [bqk, bout]

    kernel = functools.partial(_spatial_attn_kernel, use_bias=use_bias,
                               n_valid=n_valid, masked=masked,
                               approx_recip=approx_recip)

    # VMEM sizing from the actual tiles (double-buffered blocks + f32 intermediates).
    op_b = x_sf.dtype.itemsize
    out_b = jnp.dtype(out_dtype).itemsize
    est = (2 * TQ * C * op_b + 2 * Cr * HWp * op_b + 4 * C * Cr * op_b
           + 2 * C * TQ * out_b + 3 * TQ * HWp * 4
           + 4 * (2 * Cr * TQ + C * TQ + TQ * Cr))
    vmem_limit = int(min(max(2 * est, 32 * 1024 * 1024), 96 * 1024 * 1024))

    return pl.pallas_call(
        kernel,
        out_shape=jax.ShapeDtypeStruct((B, C, HWp), out_dtype),
        grid_spec=pltpu.PrefetchScalarGridSpec(
            num_scalar_prefetch=0,
            grid=grid,
            in_specs=in_specs,
            out_specs=pl.BlockSpec((1, C, TQ), lambda b, q: (b, 0, q)),
        ),
        compiler_params=pltpu.CompilerParams(
            dimension_semantics=("parallel", "parallel"),   # no carry -> both parallel
            vmem_limit_bytes=vmem_limit,
        ),
    )(*args)


# ----------------------------- channel attention ----------------------------- #

def _channel_attn_kernel(*refs, use_bias, n_valid, masked):
    if use_bias:
        x_ref, fr_ref, wq_ref, wk_ref, wv_ref, wo_ref, b_ref, o_ref = refs
    else:
        x_ref, fr_ref, wq_ref, wk_ref, wv_ref, wo_ref, o_ref = refs
        b_ref = None

    x = x_ref[0]                                                         # (C,  HWp)
    fr = fr_ref[0]                                                       # (Cr, HWp)
    cdt = x.dtype

    q_t = jnp.dot(wq_ref[...], x, preferred_element_type=jnp.float32)    # scale folded
    k_t = jnp.dot(wk_ref[...], fr, preferred_element_type=jnp.float32)
    v_t = jnp.dot(wv_ref[...], fr, preferred_element_type=jnp.float32)
    if use_bias:
        q_t = q_t + b_ref[:, 0:1]
        k_t = k_t + b_ref[:, 1:2]
        v_t = v_t + b_ref[:, 2:3]
    if masked:   # padded token columns must not contribute to the (C,C) contraction
        key_idx = lax.broadcasted_iota(jnp.int32, k_t.shape, 1)
        k_t = jnp.where(key_idx < n_valid, k_t, 0.0)

    # dots^T[cq, ck] = sum_p q[cq, p] k[ck, p]   (transpose-RHS, K = HWp)
    dots_t = lax.dot_general(q_t.astype(cdt), k_t.astype(cdt),
                             (((1,), (1,)), ((), ())),
                             preferred_element_type=jnp.float32)          # (C, C)

    # PyTorch softmax(dim=-1) on dots  ==  softmax over axis 0 of dots^T.
    m = jnp.max(dots_t, axis=0, keepdims=True)
    e = jnp.exp(dots_t - m)
    l = jnp.sum(e, axis=0, keepdims=True)
    attn_t = e * (1.0 / l)                                                # attn^T

    y_t = jnp.dot(attn_t.astype(cdt), v_t.astype(cdt),
                  preferred_element_type=jnp.float32)                     # (C, HWp)
    out_t = jnp.dot(wo_ref[...], y_t.astype(cdt),
                    preferred_element_type=jnp.float32)                   # (C, HWp)
    if use_bias:
        out_t = out_t + b_ref[:, 3:4]
    o_ref[0] = out_t.astype(o_ref.dtype)


def _channel_attention(x_cf, fr_cf, wq, wk, wv, wo, *, b_cols, n_valid, use_bias,
                       out_dtype):
    B, C, HWp = x_cf.shape
    Cr = fr_cf.shape[1]
    masked = n_valid != HWp
    in_specs = [
        pl.BlockSpec((1, C, HWp), lambda b: (b, 0, 0)),
        pl.BlockSpec((1, Cr, HWp), lambda b: (b, 0, 0)),
        pl.BlockSpec((C, C), lambda b: (0, 0)),
        pl.BlockSpec((C, Cr), lambda b: (0, 0)),
        pl.BlockSpec((C, Cr), lambda b: (0, 0)),
        pl.BlockSpec((C, C), lambda b: (0, 0)),
    ]
    args = [x_cf, fr_cf, wq, wk, wv, wo]
    if use_bias:
        in_specs.append(pl.BlockSpec((C, 4), lambda b: (0, 0)))
        args.append(b_cols)

    kernel = functools.partial(_channel_attn_kernel, use_bias=use_bias,
                               n_valid=n_valid, masked=masked)

    op_b = x_cf.dtype.itemsize
    est = (2 * (C + Cr) * HWp * op_b + 2 * C * HWp * jnp.dtype(out_dtype).itemsize
           + 4 * C * HWp * 4 + 3 * C * C * 4
           + 2 * (2 * C * C + 2 * C * Cr) * op_b)
    vmem_limit = int(min(max(2 * est, 32 * 1024 * 1024), 96 * 1024 * 1024))

    return pl.pallas_call(
        kernel,
        out_shape=jax.ShapeDtypeStruct((B, C, HWp), out_dtype),
        grid_spec=pltpu.PrefetchScalarGridSpec(
            num_scalar_prefetch=0,
            grid=(B,),
            in_specs=in_specs,
            out_specs=pl.BlockSpec((1, C, HWp), lambda b: (b, 0, 0)),
        ),
        compiler_params=pltpu.CompilerParams(
            dimension_semantics=("parallel",),
            vmem_limit_bytes=vmem_limit,
        ),
    )(*args)


# --------------------------------- module ------------------------------------ #

class Attention:
    """JAX/Pallas port of the PyTorch Attention (BaseAttention) module."""

    def __init__(self, input_ch, ref_ch, use_bias=False, mode='spatial', *,
                 key, param_dtype=jnp.float32, mxu_dtype=jnp.bfloat16,
                 out_dtype=None):
        assert mode in ('spatial', 'channel')
        self.input_ch, self.ref_ch = input_ch, ref_ch
        self.use_bias, self.mode = use_bias, mode
        self.scale = float(input_ch) ** -0.5
        self.mxu_dtype = mxu_dtype
        self.out_dtype = out_dtype

        ks = jax.random.split(key, 8)

        def linear(kw, kb, fan_in, fan_out):
            # nn.Linear default init: U(-1/sqrt(fan_in), 1/sqrt(fan_in)), weight (out, in).
            bound = 1.0 / fan_in ** 0.5
            w_ = jax.random.uniform(kw, (fan_out, fan_in), param_dtype, -bound, bound)
            b_ = (jax.random.uniform(kb, (fan_out,), param_dtype, -bound, bound)
                  if use_bias else None)
            return w_, b_

        self.wq, self.bq = linear(ks[0], ks[1], input_ch, input_ch)
        self.wk, self.bk = linear(ks[2], ks[3], ref_ch, input_ch)
        self.wv, self.bv = linear(ks[4], ks[5], ref_ch, input_ch)
        self.wo, self.bo = linear(ks[6], ks[7], input_ch, input_ch)

        f32 = jnp.float32
        cdt = mxu_dtype
        if mode == 'spatial':
            # Host-side weight fusion + scale folding (see header); the dropped q@bk
            # term is constant per query row and cancels in softmax.
            self.mqk = (self.scale *
                        (self.wq.astype(f32).T @ self.wk.astype(f32))).astype(cdt)
            self.wov = (self.wo.astype(f32) @ self.wv.astype(f32)).astype(cdt)
            if use_bias:
                self.bqk = (self.scale *
                            (self.bq.astype(f32) @ self.wk.astype(f32)))[None, :]
                self.bout = (self.wo.astype(f32) @ self.bv.astype(f32)
                             + self.bo.astype(f32))[:, None]
            else:
                self.bqk = self.bout = None
        else:
            self.wq_s = (self.scale * self.wq.astype(f32)).astype(cdt)   # scale folded
            self.wk_c = self.wk.astype(cdt)
            self.wv_c = self.wv.astype(cdt)
            self.wo_c = self.wo.astype(cdt)
            if use_bias:
                self.b_cols = jnp.stack(
                    [self.scale * self.bq, self.bk, self.bv, self.bo],
                    axis=1).astype(f32)                                   # (C, 4)
            else:
                self.b_cols = None

    def __call__(self, x, fr):
        b, c, h, w = x.shape
        assert c == self.input_ch and fr.shape[1] == self.ref_ch
        hw = h * w
        hwp = -(-hw // 128) * 128            # pad tokens to a lane multiple (128)
        cdt = self.mxu_dtype
        out_dtype = x.dtype if self.out_dtype is None else self.out_dtype

        fr_cf = fr.reshape(b, self.ref_ch, hw)
        if hwp != hw:
            fr_cf = jnp.pad(fr_cf, ((0, 0), (0, 0), (0, hwp - hw)))
        fr_cf = fr_cf.astype(cdt)

        if self.mode == 'spatial':
            # TODO(synk): for very large H*W keep x channels-first and transpose the
            # small (C, TQ) tile in-kernel (XLU) instead of this host transpose.
            x_sf = jnp.transpose(x.reshape(b, c, hw), (0, 2, 1))
            if hwp != hw:
                x_sf = jnp.pad(x_sf, ((0, 0), (0, hwp - hw), (0, 0)))
            x_sf = x_sf.astype(cdt)
            out_cf = _spatial_attention(
                x_sf, fr_cf, self.mqk, self.wov, self.bqk, self.bout,
                n_valid=hw, use_bias=self.use_bias, out_dtype=out_dtype)
        else:
            x_cf = x.reshape(b, c, hw)
            if hwp != hw:
                x_cf = jnp.pad(x_cf, ((0, 0), (0, 0), (0, hwp - hw)))
            x_cf = x_cf.astype(cdt)
            out_cf = _channel_attention(
                x_cf, fr_cf, self.wq_s, self.wk_c, self.wv_c, self.wo_c,
                b_cols=self.b_cols, n_valid=hw, use_bias=self.use_bias,
                out_dtype=out_dtype)

        return out_cf[:, :, :hw].reshape(b, c, h, w)


# ------------------------------- pure-JAX reference --------------------------- #

def _ref_attention(mod, x, fr):
    """Literal translation of the PyTorch forward (f32, XLA ops) for checking."""
    b, c, h, w = x.shape
    hw = h * w
    xs = jnp.transpose(x.reshape(b, c, hw), (0, 2, 1))
    frs = jnp.transpose(fr.reshape(b, fr.shape[1], hw), (0, 2, 1))

    def lin(t, wgt, bias):
        y = jnp.einsum('bpi,oi->bpo', t, wgt)
        return y + bias if bias is not None else y

    q = lin(xs, mod.wq, mod.bq)
    k = lin(frs, mod.wk, mod.bk)
    v = lin(frs, mod.wv, mod.bv)
    kt = jnp.transpose(k, (0, 2, 1))
    if mod.mode == 'spatial':
        dots = jnp.matmul(q, kt) * mod.scale
        a = jax.nn.softmax(dots, axis=-1)
        y = jnp.matmul(a, v)
    else:
        dots = jnp.matmul(kt, q) * mod.scale
        a = jax.nn.softmax(dots, axis=-1)
        y = jnp.matmul(v, a)
    y = lin(y, mod.wo, mod.bo)
    return jnp.transpose(y, (0, 2, 1)).reshape(b, c, h, w)


if __name__ == "__main__":
    key = jax.random.PRNGKey(0)
    kx, kf, kp1, kp2, kp3 = jax.random.split(key, 5)

    B, C_IN, C_REF, H, W = 2, 32, 16, 16, 16
    x = jax.random.normal(kx, (B, C_IN, H, W), jnp.float32)
    fr = jax.random.normal(kf, (B, C_REF, H, W), jnp.float32)

    # 1) module defaults: spatial, no bias, bf16 MXU operands / f32 accumulation.
    attn = Attention(C_IN, C_REF, use_bias=False, mode='spatial', key=kp1)
    out = jax.block_until_ready(attn(x, fr))
    assert out.shape == (B, C_IN, H, W), out.shape
    ref = jax.block_until_ready(_ref_attention(attn, x, fr))
    assert jnp.allclose(out, ref, atol=5e-2, rtol=5e-2), \
        float(jnp.max(jnp.abs(out - ref)))

    # 2) f32 MXU operands: tight check (fusion only reorders FP contractions).
    attn32 = Attention(C_IN, C_REF, use_bias=False, mode='spatial', key=kp1,
                       mxu_dtype=jnp.float32)
    out32 = jax.block_until_ready(attn32(x, fr))
    assert jnp.allclose(out32, ref, atol=1e-3, rtol=1e-3), \
        float(jnp.max(jnp.abs(out32 - ref)))

    # 3) channel-attention mode (bf16 default).
    attn_c = Attention(C_IN, C_REF, use_bias=False, mode='channel', key=kp2)
    out_c = jax.block_until_ready(attn_c(x, fr))
    ref_c = jax.block_until_ready(_ref_attention(attn_c, x, fr))
    assert jnp.allclose(out_c, ref_c, atol=5e-2, rtol=5e-2), \
        float(jnp.max(jnp.abs(out_c - ref_c)))

    # 4) use_bias=True (spatial, bf16).
    attn_b = Attention(C_IN, C_REF, use_bias=True, mode='spatial', key=kp3)
    out_b = jax.block_until_ready(attn_b(x, fr))
    ref_b = jax.block_until_ready(_ref_attention(attn_b, x, fr))
    assert jnp.allclose(out_b, ref_b, atol=5e-2, rtol=5e-2), \
        float(jnp.max(jnp.abs(out_b - ref_b)))

    # 5) H*W not a multiple of 128 -> padded/masked path (spatial and channel).
    H2 = W2 = 10
    x2 = jax.random.normal(kx, (B, C_IN, H2, W2), jnp.float32)
    fr2 = jax.random.normal(kf, (B, C_REF, H2, W2), jnp.float32)
    out_p = jax.block_until_ready(attn(x2, fr2))
    assert out_p.shape == (B, C_IN, H2, W2), out_p.shape
    ref_p = jax.block_until_ready(_ref_attention(attn, x2, fr2))
    assert jnp.allclose(out_p, ref_p, atol=5e-2, rtol=5e-2), \
        float(jnp.max(jnp.abs(out_p - ref_p)))
    out_cp = jax.block_until_ready(attn_c(x2, fr2))
    ref_cp = jax.block_until_ready(_ref_attention(attn_c, x2, fr2))
    assert jnp.allclose(out_cp, ref_cp, atol=5e-2, rtol=5e-2), \
        float(jnp.max(jnp.abs(out_cp - ref_cp)))

    print("KERNEL_OK")
</pallas_src>

<mosaic_0001>
module attributes {stable_mosaic.version = 11 : i64} {
  func.func @_spatial_attn_kernel(%arg0: i32, %arg1: i32, %arg2: memref<1x256x32xbf16, #tpu.memory_space<vmem>>, %arg3: memref<1x16x256xbf16, #tpu.memory_space<vmem>>, %arg4: memref<32x16xbf16, #tpu.memory_space<vmem>>, %arg5: memref<32x16xbf16, #tpu.memory_space<vmem>>, %arg6: memref<1x32x256xf32, #tpu.memory_space<vmem>>) attributes {dimension_semantics = [#tpu.dimension_semantics<parallel>, #tpu.dimension_semantics<parallel>], iteration_bounds = array<i64: 2, 1>, scalar_prefetch = 0 : i64, scratch_operands = 0 : i64, tpu.core_type = #tpu.core_type<tc>, window_params = [{transform_indices = @transform_0, window_bounds = array<i64: 1, 256, 32>}, {transform_indices = @transform_1, window_bounds = array<i64: 1, 16, 256>}, {pipeline_mode = #tpu.pipeline_mode<synchronous>, transform_indices = @transform_2, window_bounds = array<i64: 32, 16>}, {pipeline_mode = #tpu.pipeline_mode<synchronous>, transform_indices = @transform_3, window_bounds = array<i64: 32, 16>}, {transform_indices = @transform_4, window_bounds = array<i64: 1, 32, 256>}]} {
    %c0 = arith.constant 0 : index
    %c0_0 = arith.constant 0 : index
    %c0_1 = arith.constant 0 : index
    %0 = vector.load %arg2[%c0, %c0_0, %c0_1] : memref<1x256x32xbf16, #tpu.memory_space<vmem>>, vector<1x256x32xbf16>
    %1 = vector.shape_cast %0 : vector<1x256x32xbf16> to vector<256x32xbf16>
    %c0_2 = arith.constant 0 : index
    %c0_3 = arith.constant 0 : index
    %2 = vector.load %arg4[%c0_2, %c0_3] : memref<32x16xbf16, #tpu.memory_space<vmem>>, vector<32x16xbf16>
    %cst = arith.constant dense<0.000000e+00> : vector<256x16xf32>
    %3 = tpu.matmul %1, %2, %cst {dimension_numbers = #tpu.dot_dimension_numbers<[1], [0], [0], [1], [0, 0, 1, 1], [], []>} : vector<256x32xbf16>, vector<32x16xbf16>, vector<256x16xf32> -> vector<256x16xf32>
    %4 = arith.truncf %3 : vector<256x16xf32> to vector<256x16xbf16>
    %c0_4 = arith.constant 0 : index
    %c0_5 = arith.constant 0 : index
    %c0_6 = arith.constant 0 : index
    %5 = vector.load %arg3[%c0_4, %c0_5, %c0_6] : memref<1x16x256xbf16, #tpu.memory_space<vmem>>, vector<1x16x256xbf16>
    %6 = vector.shape_cast %5 : vector<1x16x256xbf16> to vector<16x256xbf16>
    %cst_7 = arith.constant dense<0.000000e+00> : vector<256x256xf32>
    %7 = tpu.matmul %4, %6, %cst_7 {dimension_numbers = #tpu.dot_dimension_numbers<[1], [0], [0], [1], [0, 0, 1, 1], [], []>} : vector<256x16xbf16>, vector<16x256xbf16>, vector<256x256xf32> -> vector<256x256xf32>
    %cst_8 = arith.constant dense<0xFF800000> : vector<256xf32>
    %8 = vector.multi_reduction <maximumf>, %7, %cst_8 [1] : vector<256x256xf32> to vector<256xf32>
    %9 = vector.shape_cast %8 : vector<256xf32> to vector<256x1xf32>
    %10 = vector.broadcast %9 : vector<256x1xf32> to vector<256x256xf32>
    %11 = arith.subf %7, %10 : vector<256x256xf32>
    %12 = math.exp %11 : vector<256x256xf32>
    %cst_9 = arith.constant dense<0.000000e+00> : vector<256xf32>
    %13 = vector.multi_reduction <add>, %12, %cst_9 [1] : vector<256x256xf32> to vector<256xf32>
    %14 = vector.shape_cast %13 : vector<256xf32> to vector<256x1xf32>
    %15 = tpu.reciprocal %14 {approx = true} : vector<256x1xf32> -> vector<256x1xf32>
    %16 = vector.broadcast %15 : vector<256x1xf32> to vector<256x256xf32>
    %17 = arith.mulf %12, %16 : vector<256x256xf32>
    %c0_10 = arith.constant 0 : index
    %c0_11 = arith.constant 0 : index
    %c0_12 = arith.constant 0 : index
    %18 = vector.load %arg3[%c0_10, %c0_11, %c0_12] : memref<1x16x256xbf16, #tpu.memory_space<vmem>>, vector<1x16x256xbf16>
    %19 = vector.shape_cast %18 : vector<1x16x256xbf16> to vector<16x256xbf16>
    %20 = arith.truncf %17 : vector<256x256xf32> to vector<256x256xbf16>
    %cst_13 = arith.constant dense<0.000000e+00> : vector<16x256xf32>
    %21 = tpu.matmul %19, %20, %cst_13 {dimension_numbers = #tpu.dot_dimension_numbers<[1], [1], [0], [0], [0, 0, 1, 0], [], []>} : vector<16x256xbf16>, vector<256x256xbf16>, vector<16x256xf32> -> vector<16x256xf32>
    %c0_14 = arith.constant 0 : index
    %c0_15 = arith.constant 0 : index
    %22 = vector.load %arg5[%c0_14, %c0_15] : memref<32x16xbf16, #tpu.memory_space<vmem>>, vector<32x16xbf16>
    %23 = arith.truncf %21 : vector<16x256xf32> to vector<16x256xbf16>
    %cst_16 = arith.constant dense<0.000000e+00> : vector<32x256xf32>
    %24 = tpu.matmul %22, %23, %cst_16 {dimension_numbers = #tpu.dot_dimension_numbers<[1], [0], [0], [1], [0, 0, 1, 1], [], []>} : vector<32x16xbf16>, vector<16x256xbf16>, vector<32x256xf32> -> vector<32x256xf32>
    %c0_17 = arith.constant 0 : index
    %c0_18 = arith.constant 0 : index
    %c0_19 = arith.constant 0 : index
    %25 = vector.load %arg6[%c0_17, %c0_18, %c0_19] : memref<1x32x256xf32, #tpu.memory_space<vmem>>, vector<1x32x256xf32>
    %26 = vector.shape_cast %25 : vector<1x32x256xf32> to vector<32x256xf32>
    %27 = vector.shape_cast %24 : vector<32x256xf32> to vector<1x32x256xf32>
    tpu.vector_store %arg6[%c0_17, %c0_18, %c0_19], %27 {strides = array<i32>} : memref<1x32x256xf32, #tpu.memory_space<vmem>>, vector<1x32x256xf32>,
    return
  }
  func.func @transform_0(%arg0: i32, %arg1: i32) -> (i32, i32, i32) {
    %c0_i32 = arith.constant 0 : i32
    %c0_i32_0 = arith.constant 0 : i32
    return %arg0, %arg1, %c0_i32 : i32, i32, i32
  }
  func.func @transform_1(%arg0: i32, %arg1: i32) -> (i32, i32, i32) {
    %c0_i32 = arith.constant 0 : i32
    %c0_i32_0 = arith.constant 0 : i32
    %c0_i32_1 = arith.constant 0 : i32
    return %arg0, %c0_i32, %c0_i32_0 : i32, i32, i32
  }
  func.func @transform_2(%arg0: i32, %arg1: i32) -> (i32, i32) {
    %c0_i32 = arith.constant 0 : i32
    %c0_i32_0 = arith.constant 0 : i32
    %c0_i32_1 = arith.constant 0 : i32
    return %c0_i32, %c0_i32_0 : i32, i32
  }
  func.func @transform_3(%arg0: i32, %arg1: i32) -> (i32, i32) {
    %c0_i32 = arith.constant 0 : i32
    %c0_i32_0 = arith.constant 0 : i32
    %c0_i32_1 = arith.constant 0 : i32
    return %c0_i32, %c0_i32_0 : i32, i32
  }
  func.func @transform_4(%arg0: i32, %arg1: i32) -> (i32, i32, i32) {
    %c0_i32 = arith.constant 0 : i32
    %c0_i32_0 = arith.constant 0 : i32
    return %arg0, %c0_i32, %arg1 : i32, i32, i32
  }
}

</mosaic_0001>

<llo_original>
// kernel: tpu_custom_call.1
$region0: #{tpu_custom_call.1}
  #allocation0 [shape = 'u32[]', space=smem, size = 0x4, offset = 0x4, fixed_abs, tag = 'smem constant byte address 0x4 - core index']
  #allocation1 [shape = 'u32[144,128]{1,0:T(1,128)}', space=vmem, size = 0x12000, scoped, tag = 'internal scratch']
  %s0 = inlined_call_operand.vmem [shape: bf16[2,256,32], index: 0, kind: input, shape index: {}]
  %s1 = inlined_call_operand.vmem [shape: bf16[2,16,256], index: 1, kind: input, shape index: {}]
  %s2 = inlined_call_operand.vmem [shape: bf16[32,16], index: 2, kind: input, shape index: {}]
  %s3 = inlined_call_operand.vmem [shape: bf16[32,16], index: 3, kind: input, shape index: {}]
  %s4 = inlined_call_operand.hbm [shape: f32[2,32,256], index: 4, kind: output, shape index: {}]
  %s5 = sld [smem:[#allocation0]]
  $region49: #{tpu_custom_call.1} parent=0
    _
  %s7 = ssub.s32 1, %s5
  %s8 = scalar_select 0, %s7, %s5
  $region1: #{tpu_custom_call.1} parent=0
    #allocation2 [shape = 'u8[65536]{0}', space=vmem, size = 0x10000, scoped, tag = 'output window, operand 0']
    #allocation3 [shape = 's32[2]{0}', space=sflag, size = 0x8, scoped, tag = 'scoped memory for tpu_custom_call.1']
    %9 = vsyncpa [#allocation3], 0
    %s10 = scalar_lea.sflag [#allocation3], 1
    %11 = vsyncpa %s10, 0
    loop: start=0, step=1, limit=4
    $region2: #{tpu_custom_call.1} parent=1 // loop_pre_header
      _
    $region3: #{tpu_custom_call.1} parent=1 // loop_header
      %s13 = sphi 0, %s17
      %p14 = scmp.ge.s32.totalorder %s13, 4
      %s20 = sphi 0, %s32
      %s21 = sphi 0, %s28
      %s22 = sphi 0, %s20
      %s23 = sphi 0, %s21
      %s24 = sphi 0, %s22
      %s25 = sphi 0, %s23
      %s37 = sphi 0, %s39
      %s40 = sphi 0, %s37
      %s41 = sphi 0, %s40
      %s57 = sphi 0, %s41
      %s63 = sphi 0, %s65
      %s66 = sphi 0, %s63
      %s67 = sphi 0, %s66
      %s83 = sphi 0, %s67
      %s87 = sphi 0, %s87
      %s89 = sphi 0, %s87
      %s90 = sphi 0, %s89
      %s104 = sphi 0, %s90
      %s108 = sphi 0, %s108
      %s110 = sphi 0, %s108
      %s111 = sphi 0, %s110
      %s125 = sphi 0, %s111
      %s133 = sphi 0, %s135
      %s136 = sphi 0, %s133
      %s137 = sphi 0, %s136
      %s153 = sphi 0, %s137
    $region4: #{tpu_custom_call.1} parent=1 // loop_header_branch
      %16 = sbr.rel (%p14) target = $region8
    $region5: #{tpu_custom_call.1} parent=1 // loop_body
      %s18 = ssub.s32 %s13, 1
      %s19 = ssub.s32 %s13, 2
      %s26 = sadd.s32 1, %s21
      %p27 = scmp.ge.s32.totalorder %s26, 1
      %s28 = scalar_select %p27, 0, %s26
      %s29 = sadd.s32 1, %s20
      %s30 = scalar_select %p27, %s29, %s20
      %p31 = scmp.ge.s32.totalorder %s30, 2
      %s32 = scalar_select %p31, 0, %s30
      %s33 = ssub.s32 %s20, %s32
      %s34 = ssub.s32 %s21, %s28
      %s35 = sor.u32 %s33, %s34
      %p36 = scmp.eq.s32.totalorder %s35, 0
      %s38 = sadd.s32 %s37, 1
      %s39 = scalar_select %p36, %s37, %s38
      %p42 = pneg %p36
      %p43 = scmp.eq.s32.totalorder %s13, 1
      %p44 = por %p42, %p43
      %p45 = scmp.ne.s32.totalorder %s37, %s40
      %p46 = scmp.eq.s32.totalorder %s13, 0
      %p47 = por %p45, %p46
      %p48 = scmp.ne.s32.totalorder %s37, %s40
      %p49 = scmp.eq.s32.totalorder %s18, 1
      %p50 = por %p48, %p49
      %p51 = scmp.ne.s32.totalorder %s40, %s41
      %p52 = scmp.eq.s32.totalorder %s18, 0
      %p53 = por %p51, %p52
      %p54 = scmp.ne.s32.totalorder %s40, %s41
      %p55 = scmp.eq.s32.totalorder %s19, 1
      %p56 = por %p54, %p55
      %p58 = scmp.ne.s32.totalorder %s41, %s57
      %p59 = scmp.eq.s32.totalorder %s19, 0
      %p60 = por %p58, %p59
      %s61 = ssub.s32 %s20, %s32
      %p62 = scmp.eq.s32.totalorder %s61, 0
      %s64 = sadd.s32 %s63, 1
      %s65 = scalar_select %p62, %s63, %s64
      %p68 = pneg %p62
      %p69 = scmp.eq.s32.totalorder %s13, 1
      %p70 = por %p68, %p69
      %p71 = scmp.ne.s32.totalorder %s63, %s66
      %p72 = scmp.eq.s32.totalorder %s13, 0
      %p73 = por %p71, %p72
      %p74 = scmp.ne.s32.totalorder %s63, %s66
      %p75 = scmp.eq.s32.totalorder %s18, 1
      %p76 = por %p74, %p75
      %p77 = scmp.ne.s32.totalorder %s66, %s67
      %p78 = scmp.eq.s32.totalorder %s18, 0
      %p79 = por %p77, %p78
      %p80 = scmp.ne.s32.totalorder %s66, %s67
      %p81 = scmp.eq.s32.totalorder %s19, 1
      %p82 = por %p80, %p81
      %p84 = scmp.ne.s32.totalorder %s67, %s83
      %p85 = scmp.eq.s32.totalorder %s19, 0
      %p86 = por %p84, %p85
      %s88 = sadd.s32 %s87, 1
      %p91 = scmp.eq.s32.totalorder %s13, 1
      %p92 = scmp.ne.s32.totalorder %s87, %s89
      %p93 = scmp.eq.s32.totalorder %s13, 0
      %p94 = por %p92, %p93
      %p95 = scmp.ne.s32.totalorder %s87, %s89
      %p96 = scmp.eq.s32.totalorder %s18, 1
      %p97 = por %p95, %p96
      %p98 = scmp.ne.s32.totalorder %s89, %s90
      %p99 = scmp.eq.s32.totalorder %s18, 0
      %p100 = por %p98, %p99
      %p101 = scmp.ne.s32.totalorder %s89, %s90
      %p102 = scmp.eq.s32.totalorder %s19, 1
      %p103 = por %p101, %p102
      %p105 = scmp.ne.s32.totalorder %s90, %s104
      %p106 = scmp.eq.s32.totalorder %s19, 0
      %p107 = por %p105, %p106
      %s109 = sadd.s32 %s108, 1
      %p112 = scmp.eq.s32.totalorder %s13, 1
      %p113 = scmp.ne.s32.totalorder %s108, %s110
      %p114 = scmp.eq.s32.totalorder %s13, 0
      %p115 = por %p113, %p114
      %p116 = scmp.ne.s32.totalorder %s108, %s110
      %p117 = scmp.eq.s32.totalorder %s18, 1
      %p118 = por %p116, %p117
      %p119 = scmp.ne.s32.totalorder %s110, %s111
      %p120 = scmp.eq.s32.totalorder %s18, 0
      %p121 = por %p119, %p120
      %p122 = scmp.ne.s32.totalorder %s110, %s111
      %p123 = scmp.eq.s32.totalorder %s19, 1
      %p124 = por %p122, %p123
      %p126 = scmp.ne.s32.totalorder %s111, %s125
      %p127 = scmp.eq.s32.totalorder %s19, 0
      %p128 = por %p126, %p127
      %s129 = ssub.s32 %s20, %s32
      %s130 = ssub.s32 %s21, %s28
      %s131 = sor.u32 %s129, %s130
      %p132 = scmp.eq.s32.totalorder %s131, 0
      %s134 = sadd.s32 %s133, 1
      %s135 = scalar_select %p132, %s133, %s134
      %p138 = pneg %p132
      %p139 = scmp.eq.s32.totalorder %s13, 1
      %p140 = por %p138, %p139
      %p141 = scmp.ne.s32.totalorder %s133, %s136
      %p142 = scmp.eq.s32.totalorder %s13, 0
      %p143 = por %p141, %p142
      %p144 = scmp.ne.s32.totalorder %s133, %s136
      %p145 = scmp.eq.s32.totalorder %s18, 1
      %p146 = por %p144, %p145
      %p147 = scmp.ne.s32.totalorder %s136, %s137
      %p148 = scmp.eq.s32.totalorder %s18, 0
      %p149 = por %p147, %p148
      %p150 = scmp.ne.s32.totalorder %s136, %s137
      %p151 = scmp.eq.s32.totalorder %s19, 1
      %p152 = por %p150, %p151
      %p154 = scmp.ne.s32.totalorder %s137, %s153
      %p155 = scmp.eq.s32.totalorder %s19, 0
      %p156 = por %p154, %p155
      %p157 = scmp.le.s32.totalorder 1, %s13
      %p158 = scmp.lt.s32.totalorder %s13, 3
      %p159 = pnand %p157, %p158
      %p160 = pneg %p159
      // Predicated region
      $region9: #{tpu_custom_call.1} parent=5 // pred_check
        _
      $region10: #{tpu_custom_call.1} parent=5 // pred_check_branch
        %162 = sbr.rel (%p159) target = $region12
      $region11: #{tpu_custom_call.1} parent=5 // pred_region
        %s163 = ssub.s32 %s13, 1
        // Predicated region
        $region13: #{tpu_custom_call.1} parent=11 // pred_check
          %p164 = pneg %p100
        $region14: #{tpu_custom_call.1} parent=11 // pred_check_branch
          %166 = sbr.rel (%p164) target = $region16
        $region15: #{tpu_custom_call.1} parent=11 // pred_region
          _
        $region16: #{tpu_custom_call.1} parent=11 // pred_fallthru
          _
        // Predicated region
        $region17: #{tpu_custom_call.1} parent=11 // pred_check
          %p167 = pneg %p121
        $region18: #{tpu_custom_call.1} parent=11 // pred_check_branch
          %169 = sbr.rel (%p167) target = $region20
        $region19: #{tpu_custom_call.1} parent=11 // pred_region
          _
        $region20: #{tpu_custom_call.1} parent=11 // pred_fallthru
          _
      $region12: #{tpu_custom_call.1} parent=5 // pred_fallthru
        _
      %p170 = scmp.lt.s32.totalorder %s13, 2
      // Predicated region
      $region21: #{tpu_custom_call.1} parent=5 // pred_check
        %p171 = pneg %p170
      $region22: #{tpu_custom_call.1} parent=5 // pred_check_branch
        %173 = sbr.rel (%p171) target = $region24
      $region23: #{tpu_custom_call.1} parent=5 // pred_region
        // Predicated region
        $region25: #{tpu_custom_call.1} parent=23 // pred_check
          %p174 = pneg %p47
        $region26: #{tpu_custom_call.1} parent=23 // pred_check_branch
          %176 = sbr.rel (%p174) target = $region28
        $region27: #{tpu_custom_call.1} parent=23 // pred_region
          %s177 = smul.u32 32, %s21
          %p178 = scmp.lt.s32.totalorder %s20, 1
          %s179 = scalar_select %p178, %s20, 1
          %p180 = scmp.lt.s32.totalorder %s177, 31
          %s181 = scalar_select %p180, %s177, 31
          %s182 = smul.addr %s179, 32
          %s183 = sadd.s32 %s181, %s182
          %s184 = smul.addr %s183, 4
          %s185 = scalar_lea.vmem %s0, %s184
          %s186 = smul.u32 32, %s21
        $region28: #{tpu_custom_call.1} parent=23 // pred_fallthru
          _
        // Predicated region
        $region29: #{tpu_custom_call.1} parent=23 // pred_check
          %p187 = pneg %p73
        $region30: #{tpu_custom_call.1} parent=23 // pred_check_branch
          %189 = sbr.rel (%p187) target = $region32
        $region31: #{tpu_custom_call.1} parent=23 // pred_region
          %p190 = scmp.lt.s32.totalorder %s20, 1
          %s191 = scalar_select %p190, %s20, 1
          %s192 = smul.addr %s191, 4
          %s193 = smul.addr %s192, 4
          %s194 = scalar_lea.vmem %s1, %s193
        $region32: #{tpu_custom_call.1} parent=23 // pred_fallthru
          _
      $region24: #{tpu_custom_call.1} parent=5 // pred_fallthru
        _
      %p195 = scmp.le.s32.totalorder 1, %s13
      %p196 = scmp.lt.s32.totalorder %s13, 3
      %p197 = pnand %p195, %p196
      %p198 = pneg %p197
      // Predicated region
      $region33: #{tpu_custom_call.1} parent=5 // pred_check
        _
      $region34: #{tpu_custom_call.1} parent=5 // pred_check_branch
        %200 = sbr.rel (%p197) target = $region36
      $region35: #{tpu_custom_call.1} parent=5 // pred_region
        %s201 = ssub.s32 %s13, 1
        %s202 = smul.u32 32, %s23
        %p203 = scmp.lt.s32.totalorder %s22, 1
        %s204 = scalar_select %p203, %s22, 1
        %p205 = scmp.lt.s32.totalorder %s202, 31
        %s206 = scalar_select %p205, %s202, 31
        %s207 = smul.addr %s204, 32
        %s208 = sadd.s32 %s206, %s207
        %s209 = smul.addr %s208, 4
        %s210 = scalar_lea.vmem %s0, %s209
        %p211 = pneg %p53
        %p212 = pneg %p50
        %p213 = scmp.lt.s32.totalorder %s22, 1
        %s214 = scalar_select %p213, %s22, 1
        %s215 = smul.addr %s214, 4
        %s216 = smul.addr %s215, 4
        %s217 = scalar_lea.vmem %s1, %s216
        %p218 = pneg %p79
        %p219 = pneg %p76
        %p220 = pneg %p100
        %p221 = pneg %p97
        %p222 = pneg %p121
        %p223 = pneg %p118
        %p224 = pneg %p149
        %p225 = pneg %p146
        %s226 = sand.u32 %s136, 1
        %s227 = scalar_lea.sflag [#allocation3], %s226
        %s228 = sand.u32 %s136, 1
        %s229 = smul.addr %s228, 64
        %s230 = scalar_lea.vmem [#allocation2], %s229
        %s231 = smul.u32 32, %s23
        %p232 = scmp.lt.s32.totalorder %s22, 1
        %s233 = scalar_select %p232, %s22, 1
        %p234 = scmp.lt.s32.totalorder %s231, 31
        %s235 = scalar_select %p234, %s231, 31
        %s236 = smul.addr %s233, 32
        %s237 = sadd.s32 %s235, %s236
        %s238 = smul.addr %s237, 4
        %s239 = scalar_lea.vmem %s0, %s238
        %s240 = smul.u32 32, %s23
        %p241 = scmp.lt.s32.totalorder %s22, 1
        %s242 = scalar_select %p241, %s22, 1
        %s243 = smul.addr %s242, 4
        %s244 = smul.addr %s243, 4
        %s245 = scalar_lea.vmem %s1, %s244
        %s246 = smul.u32 2, %s23
        %v248 = vld [vmem:[%s239] sm:$0xf]
        %v249 = vld [vmem:[%s239 + $0x4] sm:$0xf]
        %v250 = vld [vmem:[%s239 + $0x8] sm:$0xf]
        %v251 = vld [vmem:[%s239 + $0xc] sm:$0xf]
        %v252 = vld [vmem:[%s239 + $0x10] sm:$0xf]
        %v253 = vld [vmem:[%s239 + $0x14] sm:$0xf]
        %v254 = vld [vmem:[%s239 + $0x18] sm:$0xf]
        %v255 = vld [vmem:[%s239 + $0x1c] sm:$0xf]
        %v256 = vld [vmem:[%s239 + $0x20] sm:$0xf]
        %v257 = vld [vmem:[%s239 + $0x24] sm:$0xf]
        %v258 = vld [vmem:[%s239 + $0x28] sm:$0xf]
        %v259 = vld [vmem:[%s239 + $0x2c] sm:$0xf]
        %v260 = vld [vmem:[%s239 + $0x30] sm:$0xf]
        %v261 = vld [vmem:[%s239 + $0x34] sm:$0xf]
        %v262 = vld [vmem:[%s239 + $0x38] sm:$0xf]
        %v263 = vld [vmem:[%s239 + $0x3c] sm:$0xf]
        %v264 = vld [vmem:[%s239 + $0x40] sm:$0xf]
        %v265 = vld [vmem:[%s239 + $0x44] sm:$0xf]
        %v266 = vld [vmem:[%s239 + $0x48] sm:$0xf]
        %v267 = vld [vmem:[%s239 + $0x4c] sm:$0xf]
        %v268 = vld [vmem:[%s239 + $0x50] sm:$0xf]
        %v269 = vld [vmem:[%s239 + $0x54] sm:$0xf]
        %v270 = vld [vmem:[%s239 + $0x58] sm:$0xf]
        %v271 = vld [vmem:[%s239 + $0x5c] sm:$0xf]
        %v272 = vld [vmem:[%s239 + $0x60] sm:$0xf]
        %v273 = vld [vmem:[%s239 + $0x64] sm:$0xf]
        %v274 = vld [vmem:[%s239 + $0x68] sm:$0xf]
        %v275 = vld [vmem:[%s239 + $0x6c] sm:$0xf]
        %v276 = vld [vmem:[%s239 + $0x70] sm:$0xf]
        %v277 = vld [vmem:[%s239 + $0x74] sm:$0xf]
        %v278 = vld [vmem:[%s239 + $0x78] sm:$0xf]
        %v279 = vld [vmem:[%s239 + $0x7c] sm:$0xf]
        %v280 = vld [vmem:[%s2] sm:$0xf]
        %v281 = vld [vmem:[%s2 + $0x4] sm:$0xf]
        %v282 = vld [vmem:[%s2 + $0x8] sm:$0xf]
        %v283 = vld [vmem:[%s2 + $0xc] sm:$0xf]
        %v316 = vunpack.c.l.b16 %v248
        %v317 = vunpack.c.l.b16 %v249
        %v318 = vunpack.c.l.b16 %v250
        %v319 = vunpack.c.l.b16 %v251
        %v320 = vunpack.c.l.b16 %v252
        %v321 = vunpack.c.l.b16 %v253
        %v322 = vunpack.c.l.b16 %v254
        %v323 = vunpack.c.l.b16 %v255
        %v324 = vunpack.c.l.b16 %v256
        %v325 = vunpack.c.l.b16 %v257
        %v326 = vunpack.c.l.b16 %v258
        %v327 = vunpack.c.l.b16 %v259
        %v328 = vunpack.c.l.b16 %v260
        %v329 = vunpack.c.l.b16 %v261
        %v330 = vunpack.c.l.b16 %v262
        %v331 = vunpack.c.l.b16 %v263
        %v332 = vunpack.c.l.b16 %v264
        %v333 = vunpack.c.l.b16 %v265
        %v334 = vunpack.c.l.b16 %v266
        %v335 = vunpack.c.l.b16 %v267
        %v336 = vunpack.c.l.b16 %v268
        %v337 = vunpack.c.l.b16 %v269
        %v338 = vunpack.c.l.b16 %v270
        %v339 = vunpack.c.l.b16 %v271
        %v340 = vunpack.c.l.b16 %v272
        %v341 = vunpack.c.l.b16 %v273
        %v342 = vunpack.c.l.b16 %v274
        %v343 = vunpack.c.l.b16 %v275
        %v344 = vunpack.c.l.b16 %v276
        %v345 = vunpack.c.l.b16 %v277
        %v346 = vunpack.c.l.b16 %v278
        %v347 = vunpack.c.l.b16 %v279
        %v348 = vpack.c.b16 %v317, %v316
        %v349 = vpack.c.b16 %v319, %v318
        %v350 = vpack.c.b16 %v321, %v320
        %v351 = vpack.c.b16 %v323, %v322
        %v352 = vpack.c.b16 %v325, %v324
        %v353 = vpack.c.b16 %v327, %v326
        %v354 = vpack.c.b16 %v329, %v328
        %v355 = vpack.c.b16 %v331, %v330
        %v356 = vpack.c.b16 %v333, %v332
        %v357 = vpack.c.b16 %v335, %v334
        %v358 = vpack.c.b16 %v337, %v336
        %v359 = vpack.c.b16 %v339, %v338
        %v360 = vpack.c.b16 %v341, %v340
        %v361 = vpack.c.b16 %v343, %v342
        %v362 = vpack.c.b16 %v345, %v344
        %v363 = vpack.c.b16 %v347, %v346
        %v368 = vunpack.c.l.b16 %v280
        %v369 = vunpack.c.l.b16 %v281
        %v370 = vunpack.c.l.b16 %v282
        %v371 = vunpack.c.l.b16 %v283
        %v372 = vpack.c.b16 %v369, %v368
        %v373 = vpack.c.b16 %v371, %v370
        %vm376 = vcmask 261120
        %v378 = vsel %vm376, %v348, 0
        %v381 = vsel %vm376, %v349, 0
        %v384 = vsel %vm376, %v350, 0
        %v387 = vsel %vm376, %v351, 0
        %v390 = vsel %vm376, %v352, 0
        %v393 = vsel %vm376, %v353, 0
        %v396 = vsel %vm376, %v354, 0
        %v399 = vsel %vm376, %v355, 0
        %v402 = vsel %vm376, %v356, 0
        %v405 = vsel %vm376, %v357, 0
        %v408 = vsel %vm376, %v358, 0
        %v411 = vsel %vm376, %v359, 0
        %v414 = vsel %vm376, %v360, 0
        %v417 = vsel %vm376, %v361, 0
        %v420 = vsel %vm376, %v362, 0
        %v423 = vsel %vm376, %v363, 0
        %425 = vmatprep.subr.bf16.mxu0 0
        %426 = vmatpush1.bf16.msra.mxu0 %v372
        %427 = vmatprep.subr.bf16.mxu0 0
        %428 = vmatpush1.bf16.msra.mxu0 %v373
        %429 = vmatprep.subr.bf16.mxu0 0
        %430 = vmatpush1.bf16.msra.mxu0 0
        %431 = vmatprep.subr.bf16.mxu0 0
        %432 = vmatpush1.bf16.msra.mxu0 0
        %433 = vmatprep.subr.bf16.mxu0 0
        %434 = vmatpush1.bf16.msra.mxu0 0
        %435 = vmatprep.subr.bf16.mxu0 0
        %436 = vmatpush1.bf16.msra.mxu0 0
        %437 = vmatprep.subr.bf16.mxu0 0
        %438 = vmatpush1.bf16.msra.mxu0 0
        %439 = vmatprep.subr.bf16.mxu0 0
        %440 = vmatpush1.bf16.msra.mxu0 0
        %441 = vmatprep.subr.bf16.mxu0 0
        %442 = vmatpush1.bf16.msra.mxu0 0
        %443 = vmatprep.subr.bf16.mxu0 0
        %444 = vmatpush1.bf16.msra.mxu0 0
        %445 = vmatprep.subr.bf16.mxu0 0
        %446 = vmatpush1.bf16.msra.mxu0 0
        %447 = vmatprep.subr.bf16.mxu0 0
        %448 = vmatpush1.bf16.msra.mxu0 0
        %449 = vmatprep.subr.bf16.mxu0 0
        %450 = vmatpush1.bf16.msra.mxu0 0
        %451 = vmatprep.subr.bf16.mxu0 0
        %452 = vmatpush1.bf16.msra.mxu0 0
        %453 = vmatprep.subr.bf16.mxu0 0
        %454 = vmatpush1.bf16.msra.mxu0 0
        %455 = vmatprep.subr.bf16.mxu0 0
        %456 = vmatpush1.bf16.msra.mxu0 0
        %457 = vmatprep.mubr.bf16.mxu0 0
        %458 = vmatmul.mubr.bf16.gmra.mrb[0].mxu0 %v378
        %v459 = vpop.f32.mrb[0].mxu0
        %v460 = vadd.f32 0.0, %v459
        %v461 = vpop.f32.mrb[0].mxu0
        %v462 = vpop.f32.mrb[0].mxu0
        %v463 = vadd.f32 0.0, %v462
        %v464 = vpop.f32.mrb[0].mxu0
        %465 = vmatprep.mubr.bf16.mxu0 0
        %466 = vmatmul.mubr.bf16.gmra.mrb[0].mxu0 %v381
        %v467 = vpop.f32.mrb[0].mxu0
        %v468 = vadd.f32 0.0, %v467
        %v469 = vpop.f32.mrb[0].mxu0
        %v470 = vpop.f32.mrb[0].mxu0
        %v471 = vadd.f32 0.0, %v470
        %v472 = vpop.f32.mrb[0].mxu0
        %473 = vmatprep.mubr.bf16.mxu0 0
        %474 = vmatmul.mubr.bf16.gmra.mrb[0].mxu0 %v384
        %v475 = vpop.f32.mrb[0].mxu0
        %v476 = vadd.f32 0.0, %v475
        %v477 = vpop.f32.mrb[0].mxu0
        %v478 = vpop.f32.mrb[0].mxu0
        %v479 = vadd.f32 0.0, %v478
        %v480 = vpop.f32.mrb[0].mxu0
        %481 = vmatprep.mubr.bf16.mxu0 0
        %482 = vmatmul.mubr.bf16.gmra.mrb[0].mxu0 %v387
        %v483 = vpop.f32.mrb[0].mxu0
        %v484 = vadd.f32 0.0, %v483
        %v485 = vpop.f32.mrb[0].mxu0
        %v486 = vpop.f32.mrb[0].mxu0
        %v487 = vadd.f32 0.0, %v486
        %v488 = vpop.f32.mrb[0].mxu0
        %489 = vmatprep.mubr.bf16.mxu0 0
        %490 = vmatmul.mubr.bf16.gmra.mrb[0].mxu0 %v390
        %v491 = vpop.f32.mrb[0].mxu0
        %v492 = vadd.f32 0.0, %v491
        %v493 = vpop.f32.mrb[0].mxu0
        %v494 = vpop.f32.mrb[0].mxu0
        %v495 = vadd.f32 0.0, %v494
        %v496 = vpop.f32.mrb[0].mxu0
        %497 = vmatprep.mubr.bf16.mxu0 0
        %498 = vmatmul.mubr.bf16.gmra.mrb[0].mxu0 %v393
        %v499 = vpop.f32.mrb[0].mxu0
        %v500 = vadd.f32 0.0, %v499
        %v501 = vpop.f32.mrb[0].mxu0
        %v502 = vpop.f32.mrb[0].mxu0
        %v503 = vadd.f32 0.0, %v502
        %v504 = vpop.f32.mrb[0].mxu0
        %505 = vmatprep.mubr.bf16.mxu0 0
        %506 = vmatmul.mubr.bf16.gmra.mrb[0].mxu0 %v396
        %v507 = vpop.f32.mrb[0].mxu0
        %v508 = vadd.f32 0.0, %v507
        %v509 = vpop.f32.mrb[0].mxu0
        %v510 = vpop.f32.mrb[0].mxu0
        %v511 = vadd.f32 0.0, %v510
        %v512 = vpop.f32.mrb[0].mxu0
        %513 = vmatprep.mubr.bf16.mxu0 0
        %514 = vmatmul.mubr.bf16.gmra.mrb[0].mxu0 %v399
        %v515 = vpop.f32.mrb[0].mxu0
        %v516 = vadd.f32 0.0, %v515
        %v517 = vpop.f32.mrb[0].mxu0
        %v518 = vpop.f32.mrb[0].mxu0
        %v519 = vadd.f32 0.0, %v518
        %v520 = vpop.f32.mrb[0].mxu0
        %521 = vmatprep.mubr.bf16.mxu0 0
        %522 = vmatmul.mubr.bf16.gmra.mrb[0].mxu0 %v402
        %v523 = vpop.f32.mrb[0].mxu0
        %v524 = vadd.f32 0.0, %v523
        %v525 = vpop.f32.mrb[0].mxu0
        %v526 = vpop.f32.mrb[0].mxu0
        %v527 = vadd.f32 0.0, %v526
        %v528 = vpop.f32.mrb[0].mxu0
        %529 = vmatprep.mubr.bf16.mxu0 0
        %530 = vmatmul.mubr.bf16.gmra.mrb[0].mxu0 %v405
        %v531 = vpop.f32.mrb[0].mxu0
        %v532 = vadd.f32 0.0, %v531
        %v533 = vpop.f32.mrb[0].mxu0
        %v534 = vpop.f32.mrb[0].mxu0
        %v535 = vadd.f32 0.0, %v534
        %v536 = vpop.f32.mrb[0].mxu0
        %537 = vmatprep.mubr.bf16.mxu0 0
        %538 = vmatmul.mubr.bf16.gmra.mrb[0].mxu0 %v408
        %v539 = vpop.f32.mrb[0].mxu0
        %v540 = vadd.f32 0.0, %v539
        %v541 = vpop.f32.mrb[0].mxu0
        %v542 = vpop.f32.mrb[0].mxu0
        %v543 = vadd.f32 0.0, %v542
        %v544 = vpop.f32.mrb[0].mxu0
        %545 = vmatprep.mubr.bf16.mxu0 0
        %546 = vmatmul.mubr.bf16.gmra.mrb[0].mxu0 %v411
        %v547 = vpop.f32.mrb[0].mxu0
        %v548 = vadd.f32 0.0, %v547
        %v549 = vpop.f32.mrb[0].mxu0
        %v550 = vpop.f32.mrb[0].mxu0
        %v551 = vadd.f32 0.0, %v550
        %v552 = vpop.f32.mrb[0].mxu0
        %553 = vmatprep.mubr.bf16.mxu0 0
        %554 = vmatmul.mubr.bf16.gmra.mrb[0].mxu0 %v414
        %v555 = vpop.f32.mrb[0].mxu0
        %v556 = vadd.f32 0.0, %v555
        %v557 = vpop.f32.mrb[0].mxu0
        %v558 = vpop.f32.mrb[0].mxu0
        %v559 = vadd.f32 0.0, %v558
        %v560 = vpop.f32.mrb[0].mxu0
        %561 = vmatprep.mubr.bf16.mxu0 0
        %562 = vmatmul.mubr.bf16.gmra.mrb[0].mxu0 %v417
        %v563 = vpop.f32.mrb[0].mxu0
        %v564 = vadd.f32 0.0, %v563
        %v565 = vpop.f32.mrb[0].mxu0
        %v566 = vpop.f32.mrb[0].mxu0
        %v567 = vadd.f32 0.0, %v566
        %v568 = vpop.f32.mrb[0].mxu0
        %569 = vmatprep.mubr.bf16.mxu0 0
        %570 = vmatmul.mubr.bf16.gmra.mrb[0].mxu0 %v420
        %v571 = vpop.f32.mrb[0].mxu0
        %v572 = vadd.f32 0.0, %v571
        %v573 = vpop.f32.mrb[0].mxu0
        %v574 = vpop.f32.mrb[0].mxu0
        %v575 = vadd.f32 0.0, %v574
        %v576 = vpop.f32.mrb[0].mxu0
        %577 = vmatprep.mubr.bf16.mxu0 0
        %578 = vmatmul.mubr.bf16.gmra.mrb[0].mxu0 %v423
        %v579 = vpop.f32.mrb[0].mxu0
        %v580 = vadd.f32 0.0, %v579
        %v581 = vpop.f32.mrb[0].mxu0
        %v582 = vpop.f32.mrb[0].mxu0
        %v583 = vadd.f32 0.0, %v582
        %v584 = vpop.f32.mrb[0].mxu0
        %585 = vdwg.mxu0
        %v586 = vpack.c.bf16 %v463, %v460
        %v587 = vpack.c.bf16 %v471, %v468
        %v588 = vpack.c.bf16 %v479, %v476
        %v589 = vpack.c.bf16 %v487, %v484
        %v590 = vpack.c.bf16 %v495, %v492
        %v591 = vpack.c.bf16 %v503, %v500
        %v592 = vpack.c.bf16 %v511, %v508
        %v593 = vpack.c.bf16 %v519, %v516
        %v594 = vpack.c.bf16 %v527, %v524
        %v595 = vpack.c.bf16 %v535, %v532
        %v596 = vpack.c.bf16 %v543, %v540
        %v597 = vpack.c.bf16 %v551, %v548
        %v598 = vpack.c.bf16 %v559, %v556
        %v599 = vpack.c.bf16 %v567, %v564
        %v600 = vpack.c.bf16 %v575, %v572
        %v601 = vpack.c.bf16 %v583, %v580
        %v602 = vld [vmem:[%s245] sm:$0xff]
        %v603 = vld [vmem:[%s245 + $0x8] sm:$0xff]
        %v606 = vunpack.c.l.b16 %v602
        %v607 = vunpack.c.h.b16 %v602
        %v608 = vunpack.c.l.b16 %v603
        %v609 = vunpack.c.h.b16 %v603
        %v610 = vpack.c.b16 %v608, %v606
        %v611 = vpack.c.b16 %v609, %v607
        %vm614 = vcmask 130048
        %v616 = vsel %vm614, %v586, 0
        %v619 = vsel %vm614, %v587, 0
        %v622 = vsel %vm614, %v588, 0
        %v625 = vsel %vm614, %v589, 0
        %v628 = vsel %vm614, %v590, 0
        %v631 = vsel %vm614, %v591, 0
        %v634 = vsel %vm614, %v592, 0
        %v637 = vsel %vm614, %v593, 0
        %v640 = vsel %vm614, %v594, 0
        %v643 = vsel %vm614, %v595, 0
        %v646 = vsel %vm614, %v596, 0
        %v649 = vsel %vm614, %v597, 0
        %v652 = vsel %vm614, %v598, 0
        %v655 = vsel %vm614, %v599, 0
        %v658 = vsel %vm614, %v600, 0
        %v661 = vsel %vm614, %v601, 0
        %663 = vmatprep.subr.bf16.mxu0 %v611
        %664 = vmatpush1.bf16.msra.mxu0 %v610
        %665 = vmatprep.subr.bf16.mxu0 0
        %666 = vmatpush1.bf16.msra.mxu0 0
        %667 = vmatprep.subr.bf16.mxu0 0
        %668 = vmatpush1.bf16.msra.mxu0 0
        %669 = vmatprep.subr.bf16.mxu0 0
        %670 = vmatpush1.bf16.msra.mxu0 0
        %671 = vmatprep.subr.bf16.mxu0 0
        %672 = vmatpush1.bf16.msra.mxu0 0
        %673 = vmatprep.subr.bf16.mxu0 0
        %674 = vmatpush1.bf16.msra.mxu0 0
        %675 = vmatprep.subr.bf16.mxu0 0
        %676 = vmatpush1.bf16.msra.mxu0 0
        %677 = vmatprep.subr.bf16.mxu0 0
        %678 = vmatpush1.bf16.msra.mxu0 0
        %679 = vmatprep.subr.bf16.mxu0 0
        %680 = vmatpush1.bf16.msra.mxu0 0
        %681 = vmatprep.subr.bf16.mxu0 0
        %682 = vmatpush1.bf16.msra.mxu0 0
        %683 = vmatprep.subr.bf16.mxu0 0
        %684 = vmatpush1.bf16.msra.mxu0 0
        %685 = vmatprep.subr.bf16.mxu0 0
        %686 = vmatpush1.bf16.msra.mxu0 0
        %687 = vmatprep.subr.bf16.mxu0 0
        %688 = vmatpush1.bf16.msra.mxu0 0
        %689 = vmatprep.subr.bf16.mxu0 0
        %690 = vmatpush1.bf16.msra.mxu0 0
        %691 = vmatprep.subr.bf16.mxu0 0
        %692 = vmatpush1.bf16.msra.mxu0 0
        %693 = vmatprep.subr.bf16.mxu0 0
        %694 = vmatpush1.bf16.msra.mxu0 0
        %695 = vmatprep.mubr.bf16.mxu0 0
        %696 = vmatmul.mubr.bf16.gmra.mrb[0].mxu0 %v616
        %v697 = vpop.f32.mrb[0].mxu0
        %v698 = vadd.f32 0.0, %v697
        %v699 = vpop.f32.mrb[0].mxu0
        %v700 = vadd.f32 0.0, %v699
        %v701 = vpop.f32.mrb[0].mxu0
        %v702 = vadd.f32 0.0, %v701
        %v703 = vpop.f32.mrb[0].mxu0
        %v704 = vadd.f32 0.0, %v703
        %705 = vmatprep.mubr.bf16.mxu0 0
        %706 = vmatmul.mubr.bf16.gmra.mrb[0].mxu0 %v619
        %v707 = vpop.f32.mrb[0].mxu0
        %v708 = vadd.f32 0.0, %v707
        %v709 = vpop.f32.mrb[0].mxu0
        %v710 = vadd.f32 0.0, %v709
        %v711 = vpop.f32.mrb[0].mxu0
        %v712 = vadd.f32 0.0, %v711
        %v713 = vpop.f32.mrb[0].mxu0
        %v714 = vadd.f32 0.0, %v713
        %715 = vmatprep.mubr.bf16.mxu0 0
        %716 = vmatmul.mubr.bf16.gmra.mrb[0].mxu0 %v622
        %v717 = vpop.f32.mrb[0].mxu0
        %v718 = vadd.f32 0.0, %v717
        %v719 = vpop.f32.mrb[0].mxu0
        %v720 = vadd.f32 0.0, %v719
        %v721 = vpop.f32.mrb[0].mxu0
        %v722 = vadd.f32 0.0, %v721
        %v723 = vpop.f32.mrb[0].mxu0
        %v724 = vadd.f32 0.0, %v723
        %725 = vmatprep.mubr.bf16.mxu0 0
        %726 = vmatmul.mubr.bf16.gmra.mrb[0].mxu0 %v625
        %v727 = vpop.f32.mrb[0].mxu0
        %v728 = vadd.f32 0.0, %v727
        %v729 = vpop.f32.mrb[0].mxu0
        %v730 = vadd.f32 0.0, %v729
        %v731 = vpop.f32.mrb[0].mxu0
        %v732 = vadd.f32 0.0, %v731
        %v733 = vpop.f32.mrb[0].mxu0
        %v734 = vadd.f32 0.0, %v733
        %735 = vmatprep.mubr.bf16.mxu0 0
        %736 = vmatmul.mubr.bf16.gmra.mrb[0].mxu0 %v628
        %v737 = vpop.f32.mrb[0].mxu0
        %v738 = vadd.f32 0.0, %v737
        %v739 = vpop.f32.mrb[0].mxu0
        %v740 = vadd.f32 0.0, %v739
        %v741 = vpop.f32.mrb[0].mxu0
        %v742 = vadd.f32 0.0, %v741
        %v743 = vpop.f32.mrb[0].mxu0
        %v744 = vadd.f32 0.0, %v743
        %745 = vmatprep.mubr.bf16.mxu0 0
        %746 = vmatmul.mubr.bf16.gmra.mrb[0].mxu0 %v631
        %v747 = vpop.f32.mrb[0].mxu0
        %v748 = vadd.f32 0.0, %v747
        %v749 = vpop.f32.mrb[0].mxu0
        %v750 = vadd.f32 0.0, %v749
        %v751 = vpop.f32.mrb[0].mxu0
        %v752 = vadd.f32 0.0, %v751
        %v753 = vpop.f32.mrb[0].mxu0
        %v754 = vadd.f32 0.0, %v753
        %755 = vmatprep.mubr.bf16.mxu0 0
        %756 = vmatmul.mubr.bf16.gmra.mrb[0].mxu0 %v634
        %v757 = vpop.f32.mrb[0].mxu0
        %v758 = vadd.f32 0.0, %v757
        %v759 = vpop.f32.mrb[0].mxu0
        %v760 = vadd.f32 0.0, %v759
        %v761 = vpop.f32.mrb[0].mxu0
        %v762 = vadd.f32 0.0, %v761
        %v763 = vpop.f32.mrb[0].mxu0
        %v764 = vadd.f32 0.0, %v763
        %765 = vmatprep.mubr.bf16.mxu0 0
        %766 = vmatmul.mubr.bf16.gmra.mrb[0].mxu0 %v637
        %v767 = vpop.f32.mrb[0].mxu0
        %v768 = vadd.f32 0.0, %v767
        %v769 = vpop.f32.mrb[0].mxu0
        %v770 = vadd.f32 0.0, %v769
        %v771 = vpop.f32.mrb[0].mxu0
        %v772 = vadd.f32 0.0, %v771
        %v773 = vpop.f32.mrb[0].mxu0
        %v774 = vadd.f32 0.0, %v773
        %775 = vmatprep.mubr.bf16.mxu0 0
        %776 = vmatmul.mubr.bf16.gmra.mrb[0].mxu0 %v640
        %v777 = vpop.f32.mrb[0].mxu0
        %v778 = vadd.f32 0.0, %v777
        %v779 = vpop.f32.mrb[0].mxu0
        %v780 = vadd.f32 0.0, %v779
        %v781 = vpop.f32.mrb[0].mxu0
        %v782 = vadd.f32 0.0, %v781
        %v783 = vpop.f32.mrb[0].mxu0
        %v784 = vadd.f32 0.0, %v783
        %785 = vmatprep.mubr.bf16.mxu0 0
        %786 = vmatmul.mubr.bf16.gmra.mrb[0].mxu0 %v643
        %v787 = vpop.f32.mrb[0].mxu0
        %v788 = vadd.f32 0.0, %v787
        %v789 = vpop.f32.mrb[0].mxu0
        %v790 = vadd.f32 0.0, %v789
        %v791 = vpop.f32.mrb[0].mxu0
        %v792 = vadd.f32 0.0, %v791
        %v793 = vpop.f32.mrb[0].mxu0
        %v794 = vadd.f32 0.0, %v793
        %795 = vmatprep.mubr.bf16.mxu0 0
        %796 = vmatmul.mubr.bf16.gmra.mrb[0].mxu0 %v646
        %v797 = vpop.f32.mrb[0].mxu0
        %v798 = vadd.f32 0.0, %v797
        %v799 = vpop.f32.mrb[0].mxu0
        %v800 = vadd.f32 0.0, %v799
        %v801 = vpop.f32.mrb[0].mxu0
        %v802 = vadd.f32 0.0, %v801
        %v803 = vpop.f32.mrb[0].mxu0
        %v804 = vadd.f32 0.0, %v803
        %805 = vmatprep.mubr.bf16.mxu0 0
        %806 = vmatmul.mubr.bf16.gmra.mrb[0].mxu0 %v649
        %v807 = vpop.f32.mrb[0].mxu0
        %v808 = vadd.f32 0.0, %v807
        %v809 = vpop.f32.mrb[0].mxu0
        %v810 = vadd.f32 0.0, %v809
        %v811 = vpop.f32.mrb[0].mxu0
        %v812 = vadd.f32 0.0, %v811
        %v813 = vpop.f32.mrb[0].mxu0
        %v814 = vadd.f32 0.0, %v813
        %815 = vmatprep.mubr.bf16.mxu0 0
        %816 = vmatmul.mubr.bf16.gmra.mrb[0].mxu0 %v652
        %v817 = vpop.f32.mrb[0].mxu0
        %v818 = vadd.f32 0.0, %v817
        %v819 = vpop.f32.mrb[0].mxu0
        %v820 = vadd.f32 0.0, %v819
        %v821 = vpop.f32.mrb[0].mxu0
        %v822 = vadd.f32 0.0, %v821
        %v823 = vpop.f32.mrb[0].mxu0
        %v824 = vadd.f32 0.0, %v823
        %825 = vmatprep.mubr.bf16.mxu0 0
        %826 = vmatmul.mubr.bf16.gmra.mrb[0].mxu0 %v655
        %v827 = vpop.f32.mrb[0].mxu0
        %v828 = vadd.f32 0.0, %v827
        %v829 = vpop.f32.mrb[0].mxu0
        %v830 = vadd.f32 0.0, %v829
        %v831 = vpop.f32.mrb[0].mxu0
        %v832 = vadd.f32 0.0, %v831
        %v833 = vpop.f32.mrb[0].mxu0
        %v834 = vadd.f32 0.0, %v833
        %835 = vmatprep.mubr.bf16.mxu0 0
        %836 = vmatmul.mubr.bf16.gmra.mrb[0].mxu0 %v658
        %v837 = vpop.f32.mrb[0].mxu0
        %v838 = vadd.f32 0.0, %v837
        %v839 = vpop.f32.mrb[0].mxu0
        %v840 = vadd.f32 0.0, %v839
        %v841 = vpop.f32.mrb[0].mxu0
        %v842 = vadd.f32 0.0, %v841
        %v843 = vpop.f32.mrb[0].mxu0
        %v844 = vadd.f32 0.0, %v843
        %845 = vmatprep.mubr.bf16.mxu0 0
        %846 = vmatmul.mubr.bf16.gmra.mrb[0].mxu0 %v661
        %v847 = vpop.f32.mrb[0].mxu0
        %v848 = vadd.f32 0.0, %v847
        %v849 = vpop.f32.mrb[0].mxu0
        %v850 = vadd.f32 0.0, %v849
        %v851 = vpop.f32.mrb[0].mxu0
        %v852 = vadd.f32 0.0, %v851
        %v853 = vpop.f32.mrb[0].mxu0
        %v854 = vadd.f32 0.0, %v853
        %855 = vdwg.mxu0
        %v856 = vmax.f32 %v698, %v700
        %857 = vmax.xlane.f32.xlu0 %v856
        %v858 = vpop.xlane.xlu0 %857
        %v859 = vmax.f32 %v702, %v704
        %860 = vmax.xlane.f32.xlu0 %v859
        %v861 = vpop.xlane.xlu0 %860
        %v862 = vmax.f32 %v708, %v710
        %863 = vmax.xlane.f32.xlu0 %v862
        %v864 = vpop.xlane.xlu0 %863
        %v865 = vmax.f32 %v712, %v714
        %866 = vmax.xlane.f32.xlu0 %v865
        %v867 = vpop.xlane.xlu0 %866
        %v868 = vmax.f32 %v718, %v720
        %869 = vmax.xlane.f32.xlu0 %v868
        %v870 = vpop.xlane.xlu0 %869
        %v871 = vmax.f32 %v722, %v724
        %872 = vmax.xlane.f32.xlu0 %v871
        %v873 = vpop.xlane.xlu0 %872
        %v874 = vmax.f32 %v728, %v730
        %875 = vmax.xlane.f32.xlu0 %v874
        %v876 = vpop.xlane.xlu0 %875
        %v877 = vmax.f32 %v732, %v734
        %878 = vmax.xlane.f32.xlu0 %v877
        %v879 = vpop.xlane.xlu0 %878
        %v880 = vmax.f32 %v738, %v740
        %881 = vmax.xlane.f32.xlu0 %v880
        %v882 = vpop.xlane.xlu0 %881
        %v883 = vmax.f32 %v742, %v744
        %884 = vmax.xlane.f32.xlu0 %v883
        %v885 = vpop.xlane.xlu0 %884
        %v886 = vmax.f32 %v748, %v750
        %887 = vmax.xlane.f32.xlu0 %v886
        %v888 = vpop.xlane.xlu0 %887
        %v889 = vmax.f32 %v752, %v754
        %890 = vmax.xlane.f32.xlu0 %v889
        %v891 = vpop.xlane.xlu0 %890
        %v892 = vmax.f32 %v758, %v760
        %893 = vmax.xlane.f32.xlu0 %v892
        %v894 = vpop.xlane.xlu0 %893
        %v895 = vmax.f32 %v762, %v764
        %896 = vmax.xlane.f32.xlu0 %v895
        %v897 = vpop.xlane.xlu0 %896
        %v898 = vmax.f32 %v768, %v770
        %899 = vmax.xlane.f32.xlu0 %v898
        %v900 = vpop.xlane.xlu0 %899
        %v901 = vmax.f32 %v772, %v774
        %902 = vmax.xlane.f32.xlu0 %v901
        %v903 = vpop.xlane.xlu0 %902
        %v904 = vmax.f32 %v778, %v780
        %905 = vmax.xlane.f32.xlu0 %v904
        %v906 = vpop.xlane.xlu0 %905
        %v907 = vmax.f32 %v782, %v784
        %908 = vmax.xlane.f32.xlu0 %v907
        %v909 = vpop.xlane.xlu0 %908
        %v910 = vmax.f32 %v788, %v790
        %911 = vmax.xlane.f32.xlu0 %v910
        %v912 = vpop.xlane.xlu0 %911
        %v913 = vmax.f32 %v792, %v794
        %914 = vmax.xlane.f32.xlu0 %v913
        %v915 = vpop.xlane.xlu0 %914
        %v916 = vmax.f32 %v798, %v800
        %917 = vmax.xlane.f32.xlu0 %v916
        %v918 = vpop.xlane.xlu0 %917
        %v919 = vmax.f32 %v802, %v804
        %920 = vmax.xlane.f32.xlu0 %v919
        %v921 = vpop.xlane.xlu0 %920
        %v922 = vmax.f32 %v808, %v810
        %923 = vmax.xlane.f32.xlu0 %v922
        %v924 = vpop.xlane.xlu0 %923
        %v925 = vmax.f32 %v812, %v814
        %926 = vmax.xlane.f32.xlu0 %v925
        %v927 = vpop.xlane.xlu0 %926
        %v928 = vmax.f32 %v818, %v820
        %929 = vmax.xlane.f32.xlu0 %v928
        %v930 = vpop.xlane.xlu0 %929
        %v931 = vmax.f32 %v822, %v824
        %932 = vmax.xlane.f32.xlu0 %v931
        %v933 = vpop.xlane.xlu0 %932
        %v934 = vmax.f32 %v828, %v830
        %935 = vmax.xlane.f32.xlu0 %v934
        %v936 = vpop.xlane.xlu0 %935
        %v937 = vmax.f32 %v832, %v834
        %938 = vmax.xlane.f32.xlu0 %v937
        %v939 = vpop.xlane.xlu0 %938
        %v940 = vmax.f32 %v838, %v840
        %941 = vmax.xlane.f32.xlu0 %v940
        %v942 = vpop.xlane.xlu0 %941
        %v943 = vmax.f32 %v842, %v844
        %944 = vmax.xlane.f32.xlu0 %v943
        %v945 = vpop.xlane.xlu0 %944
        %v946 = vmax.f32 %v848, %v850
        %947 = vmax.xlane.f32.xlu0 %v946
        %v948 = vpop.xlane.xlu0 %947
        %v949 = vmax.f32 %v852, %v854
        %950 = vmax.xlane.f32.xlu0 %v949
        %v951 = vpop.xlane.xlu0 %950
        %v952 = vsub.f32 %v698, %v858
        %v953 = vsub.f32 %v700, %v858
        %v954 = vsub.f32 %v702, %v861
        %v955 = vsub.f32 %v704, %v861
        %v956 = vsub.f32 %v708, %v864
        %v957 = vsub.f32 %v710, %v864
        %v958 = vsub.f32 %v712, %v867
        %v959 = vsub.f32 %v714, %v867
        %v960 = vsub.f32 %v718, %v870
        %v961 = vsub.f32 %v720, %v870
        %v962 = vsub.f32 %v722, %v873
        %v963 = vsub.f32 %v724, %v873
        %v964 = vsub.f32 %v728, %v876
        %v965 = vsub.f32 %v730, %v876
        %v966 = vsub.f32 %v732, %v879
        %v967 = vsub.f32 %v734, %v879
        %v968 = vsub.f32 %v738, %v882
        %v969 = vsub.f32 %v740, %v882
        %v970 = vsub.f32 %v742, %v885
        %v971 = vsub.f32 %v744, %v885
        %v972 = vsub.f32 %v748, %v888
        %v973 = vsub.f32 %v750, %v888
        %v974 = vsub.f32 %v752, %v891
        %v975 = vsub.f32 %v754, %v891
        %v976 = vsub.f32 %v758, %v894
        %v977 = vsub.f32 %v760, %v894
        %v978 = vsub.f32 %v762, %v897
        %v979 = vsub.f32 %v764, %v897
        %v980 = vsub.f32 %v768, %v900
        %v981 = vsub.f32 %v770, %v900
        %v982 = vsub.f32 %v772, %v903
        %v983 = vsub.f32 %v774, %v903
        %v984 = vsub.f32 %v778, %v906
        %v985 = vsub.f32 %v780, %v906
        %v986 = vsub.f32 %v782, %v909
        %v987 = vsub.f32 %v784, %v909
        %v988 = vsub.f32 %v788, %v912
        %v989 = vsub.f32 %v790, %v912
        %v990 = vsub.f32 %v792, %v915
        %v991 = vsub.f32 %v794, %v915
        %v992 = vsub.f32 %v798, %v918
        %v993 = vsub.f32 %v800, %v918
        %v994 = vsub.f32 %v802, %v921
        %v995 = vsub.f32 %v804, %v921
        %v996 = vsub.f32 %v808, %v924
        %v997 = vsub.f32 %v810, %v924
        %v998 = vsub.f32 %v812, %v927
        %v999 = vsub.f32 %v814, %v927
        %v1000 = vsub.f32 %v818, %v930
        %v1001 = vsub.f32 %v820, %v930
        %v1002 = vsub.f32 %v822, %v933
        %v1003 = vsub.f32 %v824, %v933
        %v1004 = vsub.f32 %v828, %v936
        %v1005 = vsub.f32 %v830, %v936
        %v1006 = vsub.f32 %v832, %v939
        %v1007 = vsub.f32 %v834, %v939
        %v1008 = vsub.f32 %v838, %v942
        %v1009 = vsub.f32 %v840, %v942
        %v1010 = vsub.f32 %v842, %v945
        %v1011 = vsub.f32 %v844, %v945
        %v1012 = vsub.f32 %v848, %v948
        %v1013 = vsub.f32 %v850, %v948
        %v1014 = vsub.f32 %v852, %v951
        %v1015 = vsub.f32 %v854, %v951
        %v1016 = vmul.f32 %v952, 1.442695
        %v1017 = vpow.pop %v1016
        %v1018 = vmul.f32 %v953, 1.442695
        %v1019 = vpow.pop %v1018
        %v1020 = vmul.f32 %v954, 1.442695
        %v1021 = vpow.pop %v1020
        %v1022 = vmul.f32 %v955, 1.442695
        %v1023 = vpow.pop %v1022
        %v1024 = vmul.f32 %v956, 1.442695
        %v1025 = vpow.pop %v1024
        %v1026 = vmul.f32 %v957, 1.442695
        %v1027 = vpow.pop %v1026
        %v1028 = vmul.f32 %v958, 1.442695
        %v1029 = vpow.pop %v1028
        %v1030 = vmul.f32 %v959, 1.442695
        %v1031 = vpow.pop %v1030
        %v1032 = vmul.f32 %v960, 1.442695
        %v1033 = vpow.pop %v1032
        %v1034 = vmul.f32 %v961, 1.442695
        %v1035 = vpow.pop %v1034
        %v1036 = vmul.f32 %v962, 1.442695
        %v1037 = vpow.pop %v1036
        %v1038 = vmul.f32 %v963, 1.442695
        %v1039 = vpow.pop %v1038
        %v1040 = vmul.f32 %v964, 1.442695
        %v1041 = vpow.pop %v1040
        %v1042 = vmul.f32 %v965, 1.442695
        %v1043 = vpow.pop %v1042
        %v1044 = vmul.f32 %v966, 1.442695
        %v1045 = vpow.pop %v1044
        %v1046 = vmul.f32 %v967, 1.442695
        %v1047 = vpow.pop %v1046
        %v1048 = vmul.f32 %v968, 1.442695
        %v1049 = vpow.pop %v1048
        %v1050 = vmul.f32 %v969, 1.442695
        %v1051 = vpow.pop %v1050
        %v1052 = vmul.f32 %v970, 1.442695
        %v1053 = vpow.pop %v1052
        %v1054 = vmul.f32 %v971, 1.442695
        %v1055 = vpow.pop %v1054
        %v1056 = vmul.f32 %v972, 1.442695
        %v1057 = vpow.pop %v1056
        %v1058 = vmul.f32 %v973, 1.442695
        %v1059 = vpow.pop %v1058
        %v1060 = vmul.f32 %v974, 1.442695
        %v1061 = vpow.pop %v1060
        %v1062 = vmul.f32 %v975, 1.442695
        %v1063 = vpow.pop %v1062
        %v1064 = vmul.f32 %v976, 1.442695
        %v1065 = vpow.pop %v1064
        %v1066 = vmul.f32 %v977, 1.442695
        %v1067 = vpow.pop %v1066
        %v1068 = vmul.f32 %v978, 1.442695
        %v1069 = vpow.pop %v1068
        %v1070 = vmul.f32 %v979, 1.442695
        %v1071 = vpow.pop %v1070
        %v1072 = vmul.f32 %v980, 1.442695
        %v1073 = vpow.pop %v1072
        %v1074 = vmul.f32 %v981, 1.442695
        %v1075 = vpow.pop %v1074
        %v1076 = vmul.f32 %v982, 1.442695
        %v1077 = vpow.pop %v1076
        %v1078 = vmul.f32 %v983, 1.442695
        %v1079 = vpow.pop %v1078
        %v1080 = vmul.f32 %v984, 1.442695
        %v1081 = vpow.pop %v1080
        %v1082 = vmul.f32 %v985, 1.442695
        %v1083 = vpow.pop %v1082
        %v1084 = vmul.f32 %v986, 1.442695
        %v1085 = vpow.pop %v1084
        %v1086 = vmul.f32 %v987, 1.442695
        %v1087 = vpow.pop %v1086
        %v1088 = vmul.f32 %v988, 1.442695
        %v1089 = vpow.pop %v1088
        %v1090 = vmul.f32 %v989, 1.442695
        %v1091 = vpow.pop %v1090
        %v1092 = vmul.f32 %v990, 1.442695
        %v1093 = vpow.pop %v1092
        %v1094 = vmul.f32 %v991, 1.442695
        %v1095 = vpow.pop %v1094
        %v1096 = vmul.f32 %v992, 1.442695
        %v1097 = vpow.pop %v1096
        %v1098 = vmul.f32 %v993, 1.442695
        %v1099 = vpow.pop %v1098
        %v1100 = vmul.f32 %v994, 1.442695
        %v1101 = vpow.pop %v1100
        %v1102 = vmul.f32 %v995, 1.442695
        %v1103 = vpow.pop %v1102
        %v1104 = vmul.f32 %v996, 1.442695
        %v1105 = vpow.pop %v1104
        %v1106 = vmul.f32 %v997, 1.442695
        %v1107 = vpow.pop %v1106
        %v1108 = vmul.f32 %v998, 1.442695
        %v1109 = vpow.pop %v1108
        %v1110 = vmul.f32 %v999, 1.442695
        %v1111 = vpow.pop %v1110
        %v1112 = vmul.f32 %v1000, 1.442695
        %v1113 = vpow.pop %v1112
        %v1114 = vmul.f32 %v1001, 1.442695
        %v1115 = vpow.pop %v1114
        %v1116 = vmul.f32 %v1002, 1.442695
        %v1117 = vpow.pop %v1116
        %v1118 = vmul.f32 %v1003, 1.442695
        %v1119 = vpow.pop %v1118
        %v1120 = vmul.f32 %v1004, 1.442695
        %v1121 = vpow.pop %v1120
        %v1122 = vmul.f32 %v1005, 1.442695
        %v1123 = vpow.pop %v1122
        %v1124 = vmul.f32 %v1006, 1.442695
        %v1125 = vpow.pop %v1124
        %v1126 = vmul.f32 %v1007, 1.442695
        %v1127 = vpow.pop %v1126
        %v1128 = vmul.f32 %v1008, 1.442695
        %v1129 = vpow.pop %v1128
        %v1130 = vmul.f32 %v1009, 1.442695
        %v1131 = vpow.pop %v1130
        %v1132 = vmul.f32 %v1010, 1.442695
        %v1133 = vpow.pop %v1132
        %v1134 = vmul.f32 %v1011, 1.442695
        %v1135 = vpow.pop %v1134
        %v1136 = vmul.f32 %v1012, 1.442695
        %v1137 = vpow.pop %v1136
        %v1138 = vmul.f32 %v1013, 1.442695
        %v1139 = vpow.pop %v1138
        %v1140 = vmul.f32 %v1014, 1.442695
        %v1141 = vpow.pop %v1140
        %v1142 = vmul.f32 %v1015, 1.442695
        %v1143 = vpow.pop %v1142
        %v1144 = vadd.f32 %v1017, %v1019
        %1145 = vadd.xlane.f32.xlu0 %v1144
        %v1146 = vpop.xlane.xlu0 %1145
        %v1147 = vadd.f32 %v1021, %v1023
        %1148 = vadd.xlane.f32.xlu0 %v1147
        %v1149 = vpop.xlane.xlu0 %1148
        %v1150 = vadd.f32 %v1025, %v1027
        %1151 = vadd.xlane.f32.xlu0 %v1150
        %v1152 = vpop.xlane.xlu0 %1151
        %v1153 = vadd.f32 %v1029, %v1031
        %1154 = vadd.xlane.f32.xlu0 %v1153
        %v1155 = vpop.xlane.xlu0 %1154
        %v1156 = vadd.f32 %v1033, %v1035
        %1157 = vadd.xlane.f32.xlu0 %v1156
        %v1158 = vpop.xlane.xlu0 %1157
        %v1159 = vadd.f32 %v1037, %v1039
        %1160 = vadd.xlane.f32.xlu0 %v1159
        %v1161 = vpop.xlane.xlu0 %1160
        %v1162 = vadd.f32 %v1041, %v1043
        %1163 = vadd.xlane.f32.xlu0 %v1162
        %v1164 = vpop.xlane.xlu0 %1163
        %v1165 = vadd.f32 %v1045, %v1047
        %1166 = vadd.xlane.f32.xlu0 %v1165
        %v1167 = vpop.xlane.xlu0 %1166
        %v1168 = vadd.f32 %v1049, %v1051
        %1169 = vadd.xlane.f32.xlu0 %v1168
        %v1170 = vpop.xlane.xlu0 %1169
        %v1171 = vadd.f32 %v1053, %v1055
        %1172 = vadd.xlane.f32.xlu0 %v1171
        %v1173 = vpop.xlane.xlu0 %1172
        %v1174 = vadd.f32 %v1057, %v1059
        %1175 = vadd.xlane.f32.xlu0 %v1174
        %v1176 = vpop.xlane.xlu0 %1175
        %v1177 = vadd.f32 %v1061, %v1063
        %1178 = vadd.xlane.f32.xlu0 %v1177
        %v1179 = vpop.xlane.xlu0 %1178
        %v1180 = vadd.f32 %v1065, %v1067
        %1181 = vadd.xlane.f32.xlu0 %v1180
        %v1182 = vpop.xlane.xlu0 %1181
        %v1183 = vadd.f32 %v1069, %v1071
        %1184 = vadd.xlane.f32.xlu0 %v1183
        %v1185 = vpop.xlane.xlu0 %1184
        %v1186 = vadd.f32 %v1073, %v1075
        %1187 = vadd.xlane.f32.xlu0 %v1186
        %v1188 = vpop.xlane.xlu0 %1187
        %v1189 = vadd.f32 %v1077, %v1079
        %1190 = vadd.xlane.f32.xlu0 %v1189
        %v1191 = vpop.xlane.xlu0 %1190
        %v1192 = vadd.f32 %v1081, %v1083
        %1193 = vadd.xlane.f32.xlu0 %v1192
        %v1194 = vpop.xlane.xlu0 %1193
        %v1195 = vadd.f32 %v1085, %v1087
        %1196 = vadd.xlane.f32.xlu0 %v1195
        %v1197 = vpop.xlane.xlu0 %1196
        %v1198 = vadd.f32 %v1089, %v1091
        %1199 = vadd.xlane.f32.xlu0 %v1198
        %v1200 = vpop.xlane.xlu0 %1199
        %v1201 = vadd.f32 %v1093, %v1095
        %1202 = vadd.xlane.f32.xlu0 %v1201
        %v1203 = vpop.xlane.xlu0 %1202
        %v1204 = vadd.f32 %v1097, %v1099
        %1205 = vadd.xlane.f32.xlu0 %v1204
        %v1206 = vpop.xlane.xlu0 %1205
        %v1207 = vadd.f32 %v1101, %v1103
        %1208 = vadd.xlane.f32.xlu0 %v1207
        %v1209 = vpop.xlane.xlu0 %1208
        %v1210 = vadd.f32 %v1105, %v1107
        %1211 = vadd.xlane.f32.xlu0 %v1210
        %v1212 = vpop.xlane.xlu0 %1211
        %v1213 = vadd.f32 %v1109, %v1111
        %1214 = vadd.xlane.f32.xlu0 %v1213
        %v1215 = vpop.xlane.xlu0 %1214
        %v1216 = vadd.f32 %v1113, %v1115
        %1217 = vadd.xlane.f32.xlu0 %v1216
        %v1218 = vpop.xlane.xlu0 %1217
        %v1219 = vadd.f32 %v1117, %v1119
        %1220 = vadd.xlane.f32.xlu0 %v1219
        %v1221 = vpop.xlane.xlu0 %1220
        %v1222 = vadd.f32 %v1121, %v1123
        %1223 = vadd.xlane.f32.xlu0 %v1222
        %v1224 = vpop.xlane.xlu0 %1223
        %v1225 = vadd.f32 %v1125, %v1127
        %1226 = vadd.xlane.f32.xlu0 %v1225
        %v1227 = vpop.xlane.xlu0 %1226
        %v1228 = vadd.f32 %v1129, %v1131
        %1229 = vadd.xlane.f32.xlu0 %v1228
        %v1230 = vpop.xlane.xlu0 %1229
        %v1231 = vadd.f32 %v1133, %v1135
        %1232 = vadd.xlane.f32.xlu0 %v1231
        %v1233 = vpop.xlane.xlu0 %1232
        %v1234 = vadd.f32 %v1137, %v1139
        %1235 = vadd.xlane.f32.xlu0 %v1234
        %v1236 = vpop.xlane.xlu0 %1235
        %v1237 = vadd.f32 %v1141, %v1143
        %1238 = vadd.xlane.f32.xlu0 %v1237
        %v1239 = vpop.xlane.xlu0 %1238
        %v1240 = vrcp.pop %v1146
        %v1241 = vrcp.pop %v1149
        %v1242 = vrcp.pop %v1152
        %v1243 = vrcp.pop %v1155
        %v1244 = vrcp.pop %v1158
        %v1245 = vrcp.pop %v1161
        %v1246 = vrcp.pop %v1164
        %v1247 = vrcp.pop %v1167
        %v1248 = vrcp.pop %v1170
        %v1249 = vrcp.pop %v1173
        %v1250 = vrcp.pop %v1176
        %v1251 = vrcp.pop %v1179
        %v1252 = vrcp.pop %v1182
        %v1253 = vrcp.pop %v1185
        %v1254 = vrcp.pop %v1188
        %v1255 = vrcp.pop %v1191
        %v1256 = vrcp.pop %v1194
        %v1257 = vrcp.pop %v1197
        %v1258 = vrcp.pop %v1200
        %v1259 = vrcp.pop %v1203
        %v1260 = vrcp.pop %v1206
        %v1261 = vrcp.pop %v1209
        %v1262 = vrcp.pop %v1212
        %v1263 = vrcp.pop %v1215
        %v1264 = vrcp.pop %v1218
        %v1265 = vrcp.pop %v1221
        %v1266 = vrcp.pop %v1224
        %v1267 = vrcp.pop %v1227
        %v1268 = vrcp.pop %v1230
        %v1269 = vrcp.pop %v1233
        %v1270 = vrcp.pop %v1236
        %v1271 = vrcp.pop %v1239
        %v1272 = vmul.f32 %v1017, %v1240
        %v1273 = vmul.f32 %v1019, %v1240
        %v1274 = vmul.f32 %v1021, %v1241
        %v1275 = vmul.f32 %v1023, %v1241
        %v1276 = vmul.f32 %v1025, %v1242
        %v1277 = vmul.f32 %v1027, %v1242
        %v1278 = vmul.f32 %v1029, %v1243
        %v1279 = vmul.f32 %v1031, %v1243
        %v1280 = vmul.f32 %v1033, %v1244
        %v1281 = vmul.f32 %v1035, %v1244
        %v1282 = vmul.f32 %v1037, %v1245
        %v1283 = vmul.f32 %v1039, %v1245
        %v1284 = vmul.f32 %v1041, %v1246
        %v1285 = vmul.f32 %v1043, %v1246
        %v1286 = vmul.f32 %v1045, %v1247
        %v1287 = vmul.f32 %v1047, %v1247
        %v1288 = vmul.f32 %v1049, %v1248
        %v1289 = vmul.f32 %v1051, %v1248
        %v1290 = vmul.f32 %v1053, %v1249
        %v1291 = vmul.f32 %v1055, %v1249
        %v1292 = vmul.f32 %v1057, %v1250
        %v1293 = vmul.f32 %v1059, %v1250
        %v1294 = vmul.f32 %v1061, %v1251
        %v1295 = vmul.f32 %v1063, %v1251
        %v1296 = vmul.f32 %v1065, %v1252
        %v1297 = vmul.f32 %v1067, %v1252
        %v1298 = vmul.f32 %v1069, %v1253
        %v1299 = vmul.f32 %v1071, %v1253
        %v1300 = vmul.f32 %v1073, %v1254
        %v1301 = vmul.f32 %v1075, %v1254
        %v1302 = vmul.f32 %v1077, %v1255
        %v1303 = vmul.f32 %v1079, %v1255
        %v1304 = vmul.f32 %v1081, %v1256
        %v1305 = vmul.f32 %v1083, %v1256
        %v1306 = vmul.f32 %v1085, %v1257
        %v1307 = vmul.f32 %v1087, %v1257
        %v1308 = vmul.f32 %v1089, %v1258
        %v1309 = vmul.f32 %v1091, %v1258
        %v1310 = vmul.f32 %v1093, %v1259
        %v1311 = vmul.f32 %v1095, %v1259
        %v1312 = vmul.f32 %v1097, %v1260
        %v1313 = vmul.f32 %v1099, %v1260
        %v1314 = vmul.f32 %v1101, %v1261
        %v1315 = vmul.f32 %v1103, %v1261
        %v1316 = vmul.f32 %v1105, %v1262
        %v1317 = vmul.f32 %v1107, %v1262
        %v1318 = vmul.f32 %v1109, %v1263
        %v1319 = vmul.f32 %v1111, %v1263
        %v1320 = vmul.f32 %v1113, %v1264
        %v1321 = vmul.f32 %v1115, %v1264
        %v1322 = vmul.f32 %v1117, %v1265
        %v1323 = vmul.f32 %v1119, %v1265
        %v1324 = vmul.f32 %v1121, %v1266
        %v1325 = vmul.f32 %v1123, %v1266
        %v1326 = vmul.f32 %v1125, %v1267
        %v1327 = vmul.f32 %v1127, %v1267
        %v1328 = vmul.f32 %v1129, %v1268
        %v1329 = vmul.f32 %v1131, %v1268
        %v1330 = vmul.f32 %v1133, %v1269
        %v1331 = vmul.f32 %v1135, %v1269
        %v1332 = vmul.f32 %v1137, %v1270
        %v1333 = vmul.f32 %v1139, %v1270
        %v1334 = vmul.f32 %v1141, %v1271
        %v1335 = vmul.f32 %v1143, %v1271
        %v1336 = vpack.c.bf16 %v1274, %v1272
        %v1337 = vpack.c.bf16 %v1275, %v1273
        %v1338 = vpack.c.bf16 %v1278, %v1276
        %v1339 = vpack.c.bf16 %v1279, %v1277
        %v1340 = vpack.c.bf16 %v1282, %v1280
        %v1341 = vpack.c.bf16 %v1283, %v1281
        %v1342 = vpack.c.bf16 %v1286, %v1284
        %v1343 = vpack.c.bf16 %v1287, %v1285
        %v1344 = vpack.c.bf16 %v1290, %v1288
        %v1345 = vpack.c.bf16 %v1291, %v1289
        %v1346 = vpack.c.bf16 %v1294, %v1292
        %v1347 = vpack.c.bf16 %v1295, %v1293
        %v1348 = vpack.c.bf16 %v1298, %v1296
        %v1349 = vpack.c.bf16 %v1299, %v1297
        %v1350 = vpack.c.bf16 %v1302, %v1300
        %v1351 = vpack.c.bf16 %v1303, %v1301
        %v1352 = vpack.c.bf16 %v1306, %v1304
        %v1353 = vpack.c.bf16 %v1307, %v1305
        %v1354 = vpack.c.bf16 %v1310, %v1308
        %v1355 = vpack.c.bf16 %v1311, %v1309
        %v1356 = vpack.c.bf16 %v1314, %v1312
        %v1357 = vpack.c.bf16 %v1315, %v1313
        %v1358 = vpack.c.bf16 %v1318, %v1316
        %v1359 = vpack.c.bf16 %v1319, %v1317
        %v1360 = vpack.c.bf16 %v1322, %v1320
        %v1361 = vpack.c.bf16 %v1323, %v1321
        %v1362 = vpack.c.bf16 %v1326, %v1324
        %v1363 = vpack.c.bf16 %v1327, %v1325
        %v1364 = vpack.c.bf16 %v1330, %v1328
        %v1365 = vpack.c.bf16 %v1331, %v1329
        %v1366 = vpack.c.bf16 %v1334, %v1332
        %v1367 = vpack.c.bf16 %v1335, %v1333
        %1368 = vmatprep.subr.bf16.mxu0 %v1337
        %1369 = vmatpush1.bf16.xpose.msra.mxu0 %v1336
        %1370 = vmatprep.subr.bf16.mxu0 %v1339
        %1371 = vmatpush1.bf16.xpose.msra.mxu0 %v1338
        %1372 = vmatprep.subr.bf16.mxu0 %v1341
        %1373 = vmatpush1.bf16.xpose.msra.mxu0 %v1340
        %1374 = vmatprep.subr.bf16.mxu0 %v1343
        %1375 = vmatpush1.bf16.xpose.msra.mxu0 %v1342
        %1376 = vmatprep.subr.bf16.mxu0 %v1345
        %1377 = vmatpush1.bf16.xpose.msra.mxu0 %v1344
        %1378 = vmatprep.subr.bf16.mxu0 %v1347
        %1379 = vmatpush1.bf16.xpose.msra.mxu0 %v1346
        %1380 = vmatprep.subr.bf16.mxu0 %v1349
        %1381 = vmatpush1.bf16.xpose.msra.mxu0 %v1348
        %1382 = vmatprep.subr.bf16.mxu0 %v1351
        %1383 = vmatpush1.bf16.xpose.msra.mxu0 %v1350
        %1384 = vmatprep.subr.bf16.mxu0 %v1353
        %1385 = vmatpush1.bf16.xpose.msra.mxu0 %v1352
        %1386 = vmatprep.subr.bf16.mxu0 %v1355
        %1387 = vmatpush1.bf16.xpose.msra.mxu0 %v1354
        %1388 = vmatprep.subr.bf16.mxu0 %v1357
        %1389 = vmatpush1.bf16.xpose.msra.mxu0 %v1356
        %1390 = vmatprep.subr.bf16.mxu0 %v1359
        %1391 = vmatpush1.bf16.xpose.msra.mxu0 %v1358
        %1392 = vmatprep.subr.bf16.mxu0 %v1361
        %1393 = vmatpush1.bf16.xpose.msra.mxu0 %v1360
        %1394 = vmatprep.subr.bf16.mxu0 %v1363
        %1395 = vmatpush1.bf16.xpose.msra.mxu0 %v1362
        %1396 = vmatprep.subr.bf16.mxu0 %v1365
        %1397 = vmatpush1.bf16.xpose.msra.mxu0 %v1364
        %1398 = vmatprep.subr.bf16.mxu0 %v1367
        %1399 = vmatpush1.bf16.xpose.msra.mxu0 %v1366
        %1400 = vmatprep.mubr.bf16.mxu0 %v611
        %1401 = vmatmul.mubr.bf16.gmra.mrb[0].mxu0 %v610
        %v1402 = vpop.f32.mrb[0].mxu0
        %v1403 = vadd.f32 0.0, %v1402
        %v1404 = vpop.f32.mrb[0].mxu0
        %v1405 = vadd.f32 0.0, %v1404
        %v1406 = vpop.f32.mrb[0].mxu0
        %v1407 = vadd.f32 0.0, %v1406
        %v1408 = vpop.f32.mrb[0].mxu0
        %v1409 = vadd.f32 0.0, %v1408
        %1410 = vdwg.mxu0
        %v1411 = vld [vmem:[%s3] sm:$0xf]
        %v1412 = vld [vmem:[%s3 + $0x4] sm:$0xf]
        %v1413 = vld [vmem:[%s3 + $0x8] sm:$0xf]
        %v1414 = vld [vmem:[%s3 + $0xc] sm:$0xf]
        %v1415 = vpack.c.bf16 %v1407, %v1403
        %v1416 = vpack.c.bf16 %v1409, %v1405
        %v1421 = vunpack.c.l.b16 %v1411
        %v1422 = vunpack.c.l.b16 %v1412
        %v1423 = vunpack.c.l.b16 %v1413
        %v1424 = vunpack.c.l.b16 %v1414
        %v1425 = vpack.c.b16 %v1422, %v1421
        %v1426 = vpack.c.b16 %v1424, %v1423
        %v1428 = vsel %vm614, %v1425, 0
        %v1431 = vsel %vm614, %v1426, 0
        %1433 = vmatprep.subr.bf16.mxu0 %v1416
        %1434 = vmatpush1.bf16.msra.mxu0 %v1415
        %1435 = vmatprep.subr.bf16.mxu0 0
        %1436 = vmatpush1.bf16.msra.mxu0 0
        %1437 = vmatprep.subr.bf16.mxu0 0
        %1438 = vmatpush1.bf16.msra.mxu0 0
        %1439 = vmatprep.subr.bf16.mxu0 0
        %1440 = vmatpush1.bf16.msra.mxu0 0
        %1441 = vmatprep.subr.bf16.mxu0 0
        %1442 = vmatpush1.bf16.msra.mxu0 0
        %1443 = vmatprep.subr.bf16.mxu0 0
        %1444 = vmatpush1.bf16.msra.mxu0 0
        %1445 = vmatprep.subr.bf16.mxu0 0
        %1446 = vmatpush1.bf16.msra.mxu0 0
        %1447 = vmatprep.subr.bf16.mxu0 0
        %1448 = vmatpush1.bf16.msra.mxu0 0
        %1449 = vmatprep.subr.bf16.mxu0 0
        %1450 = vmatpush1.bf16.msra.mxu0 0
        %1451 = vmatprep.subr.bf16.mxu0 0
        %1452 = vmatpush1.bf16.msra.mxu0 0
        %1453 = vmatprep.subr.bf16.mxu0 0
        %1454 = vmatpush1.bf16.msra.mxu0 0
        %1455 = vmatprep.subr.bf16.mxu0 0
        %1456 = vmatpush1.bf16.msra.mxu0 0
        %1457 = vmatprep.subr.bf16.mxu0 0
        %1458 = vmatpush1.bf16.msra.mxu0 0
        %1459 = vmatprep.subr.bf16.mxu0 0
        %1460 = vmatpush1.bf16.msra.mxu0 0
        %1461 = vmatprep.subr.bf16.mxu0 0
        %1462 = vmatpush1.bf16.msra.mxu0 0
        %1463 = vmatprep.subr.bf16.mxu0 0
        %1464 = vmatpush1.bf16.msra.mxu0 0
        %1465 = vmatprep.mubr.bf16.mxu0 0
        %1466 = vmatmul.mubr.bf16.gmra.mrb[0].mxu0 %v1428
        %v1467 = vpop.f32.mrb[0].mxu0
        %v1468 = vadd.f32 0.0, %v1467
        %v1469 = vpop.f32.mrb[0].mxu0
        %v1470 = vadd.f32 0.0, %v1469
        %v1471 = vpop.f32.mrb[0].mxu0
        %v1472 = vadd.f32 0.0, %v1471
        %v1473 = vpop.f32.mrb[0].mxu0
        %v1474 = vadd.f32 0.0, %v1473
        %1475 = vmatprep.mubr.bf16.mxu0 0
        %1476 = vmatmul.mubr.bf16.gmra.mrb[0].mxu0 %v1431
        %v1477 = vpop.f32.mrb[0].mxu0
        %v1478 = vadd.f32 0.0, %v1477
        %v1479 = vpop.f32.mrb[0].mxu0
        %v1480 = vadd.f32 0.0, %v1479
        %v1481 = vpop.f32.mrb[0].mxu0
        %v1482 = vadd.f32 0.0, %v1481
        %v1483 = vpop.f32.mrb[0].mxu0
        %v1484 = vadd.f32 0.0, %v1483
        %1485 = vdwg.mxu0
        %1486 = vst [vmem:[%s230] sm:$0xff] %v1468
        %1487 = vst [vmem:[%s230 + $0x8] sm:$0xff] %v1470
        %1488 = vst [vmem:[%s230 + $0x10] sm:$0xff] %v1472
        %1489 = vst [vmem:[%s230 + $0x18] sm:$0xff] %v1474
        %1490 = vst [vmem:[%s230 + $0x20] sm:$0xff] %v1478
        %1491 = vst [vmem:[%s230 + $0x28] sm:$0xff] %v1480
        %1492 = vst [vmem:[%s230 + $0x30] sm:$0xff] %v1482
        %1493 = vst [vmem:[%s230 + $0x38] sm:$0xff] %v1484
        %s1494 = sand.u32 %s136, 1
        %s1495 = scalar_lea.sflag [#allocation3], %s1494
        %s1496 = sand.u32 %s136, 1
        %s1497 = smul.addr %s1496, 64
        %s1498 = scalar_lea.vmem [#allocation2], %s1497
        // Predicated region
        $region37: #{tpu_custom_call.1} parent=35 // pred_check
          %p1499 = pneg %p146
        $region38: #{tpu_custom_call.1} parent=35 // pred_check_branch
          %1501 = sbr.rel (%p1499) target = $region40
        $region39: #{tpu_custom_call.1} parent=35 // pred_region
          %s1502 = smul.u32 2, %s23
          %s1504 = ssub.s32 1024, 1024
          %1505 = vsyncadd %s1495, %s1504
          %s1506 = smul.addr %s22, 8
          %s1507 = sadd.s32 %s1502, %s1506
          %s1508 = smul.addr %s1507, 128
          %s1509 = scalar_lea.hbm %s4, %s1508
          %s1510 = sshll.u32 %s1498, 4
          %s1511 = int_to_ptr.vmem [resolvable:$true] %s1510
          %1516 = dma.vmem_to_hbm [thread:$0]  %s1511, 1024, %s1509, %s1495, 256, 256, 16
        $region40: #{tpu_custom_call.1} parent=35 // pred_fallthru
          _
      $region36: #{tpu_custom_call.1} parent=5 // pred_fallthru
        _
      %p1517 = scmp.le.s32.totalorder 2, %s13
      // Predicated region
      $region41: #{tpu_custom_call.1} parent=5 // pred_check
        %p1518 = pneg %p1517
      $region42: #{tpu_custom_call.1} parent=5 // pred_check_branch
        %1520 = sbr.rel (%p1518) target = $region44
      $region43: #{tpu_custom_call.1} parent=5 // pred_region
        %s1521 = ssub.s32 %s13, 2
        // Predicated region
        $region45: #{tpu_custom_call.1} parent=43 // pred_check
          %p1522 = pneg %p152
        $region46: #{tpu_custom_call.1} parent=43 // pred_check_branch
          %1524 = sbr.rel (%p1522) target = $region48
        $region47: #{tpu_custom_call.1} parent=43 // pred_region
          %s1525 = sand.u32 %s137, 1
          %s1526 = scalar_lea.sflag [#allocation3], %s1525
          %s1527 = sand.u32 %s137, 1
          %s1528 = smul.addr %s1527, 64
          %s1529 = scalar_lea.vmem [#allocation2], %s1528
          %1530 = dma.done %s1526, 1024
        $region48: #{tpu_custom_call.1} parent=43 // pred_fallthru
          _
      $region44: #{tpu_custom_call.1} parent=5 // pred_fallthru
        _
    $region6: #{tpu_custom_call.1} parent=1 // loop_footer
      %s17 = sadd.s32 1, %s13
    $region7: #{tpu_custom_call.1} parent=1 // loop_footer_branch
      %12 = sbr.rel target = $region3
    $region8: #{tpu_custom_call.1} parent=1 // loop_exit
      _
    %1531 = vsyncpa [#allocation3], 1
    %s1532 = scalar_lea.sflag [#allocation3], 1
    %1533 = vsyncpa %s1532, 1

</llo_original>
